<compile_context>
chip_gen: v5e
topology: v5e:2x2
jax: 0.10.0
libtpu: 0.0.40
codegen_flags: <defaults>
</compile_context>

<pallas_src>
import functools
import math

import jax
import jax.numpy as jnp
from jax.experimental import pallas as pl
from jax.experimental.pallas import tpu as pltpu


# ----------------------------------------------------------------------------- fused kernel
def block_up_kernel(x_ref, conv_ref, mm_ref, fc2_ref, out_ref, *, H, W, C):
    """One image per grid step, lane-dense (H, W*C) layout.

    x_ref    : (1, H, W*C)         image block
    conv_ref : (36, W*C)           [pos_w(9); pos_b(1); dw5x5_w(25); dw5x5_b(1)] lane-tiled
    mm_ref   : (W*C+1, 2*W*C+W*hid) rows 0:W*C = [W1blk | W2blk | FC1blk] block-diagonal,
                                     row  W*C  = [b1    | b2    | fc1_b ] lane-tiled
    fc2_ref  : (W*hid+1, W*C)      rows 0:W*hid = FC2blk, row W*hid = fc2_b lane-tiled
    out_ref  : (1, H, W*C)
    """
    WC = W * C
    WHID = fc2_ref.shape[0] - 1
    eps = 1e-6

    lane = jax.lax.broadcasted_iota(jnp.int32, (H, WC), 1)
    row = jax.lax.broadcasted_iota(jnp.int32, (H, WC), 0)
    chan = jnp.bitwise_and(lane, C - 1)           # channel index inside its C-lane group

    x = x_ref[0]                                  # (H, W*C)  -- H/8 dense vregs

    # ---- depthwise KxK conv in the lane-dense layout (roll + edge mask, no halo buffers)
    def dwconv(v, row0, K):
        r = K // 2
        rows = []                                 # row-shifted (dy) + row-masked versions
        for dy in range(-r, r + 1):
            if dy == 0:
                u = v
            else:
                u = pltpu.roll(v, (-dy) % H, axis=0)            # u[h] = v[h + dy]
                if dy > 0:
                    u = jnp.where(row < H - dy, u, 0.0)
                else:
                    u = jnp.where(row >= -dy, u, 0.0)
            rows.append(u)
        acc = None
        for iy in range(K):
            for ix in range(K):
                dx = ix - r
                u = rows[iy]
                if dx != 0:
                    u = pltpu.roll(u, (-dx * C) % WC, axis=1)   # u[..,w] = v[..,w + dx]
                    if dx > 0:
                        u = jnp.where(lane < (W - dx) * C, u, 0.0)
                    else:
                        u = jnp.where(lane >= (-dx) * C, u, 0.0)
                tap = row0 + iy * K + ix
                term = u * conv_ref[tap:tap + 1, :]             # (1, W*C) weight broadcast
                acc = term if acc is None else acc + term       # init from tap 0
        return acc

    # ---- exact per-pixel LayerNorm stats: butterfly reduction over each C-lane group ----
    def group_mean(v):
        s = v
        d = C // 2
        while d:
            up = pltpu.roll(s, WC - d, axis=1)    # s[l + d]
            dn = pltpu.roll(s, d, axis=1)         # s[l - d]
            s = s + jnp.where(jnp.bitwise_and(chan, d) == 0, up, dn)
            d //= 2
        return s * (1.0 / C)

    def layernorm(v):                             # gamma/beta folded into following matmul
        mu = group_mean(v)
        e = v - mu
        var = group_mean(e * e)
        return e * jax.lax.rsqrt(var + eps)

    # ---- pos_embed: x1 = x + DWConv3x3(x) + bias ----
    x1 = x + dwconv(x, 0, 3) + conv_ref[9:10, :]

    # ---- attn (topk=0): LN1 -> 1x1 -> DW5x5 -> 1x1, residual ----
    t = layernorm(x1)
    t1 = jnp.dot(t, mm_ref[0:WC, 0:WC],
                 preferred_element_type=jnp.float32) + mm_ref[WC:WC + 1, 0:WC]
    acc5 = dwconv(t1, 10, 5) + conv_ref[35:36, :]
    proj = jnp.dot(acc5, mm_ref[0:WC, WC:2 * WC],
                   preferred_element_type=jnp.float32) + mm_ref[WC:WC + 1, WC:2 * WC]
    x2 = x1 + proj

    # ---- MLP: LN2 -> fc1 -> exact GELU -> fc2, residual ----
    t2 = layernorm(x2)
    h = jnp.dot(t2, mm_ref[0:WC, 2 * WC:2 * WC + WHID],
                preferred_element_type=jnp.float32) + mm_ref[WC:WC + 1, 2 * WC:2 * WC + WHID]
    h = 0.5 * h * (1.0 + jax.lax.erf(h * (1.0 / math.sqrt(2.0))))   # torch.nn.GELU() (exact)
    o = jnp.dot(h, fc2_ref[0:WHID, :],
                preferred_element_type=jnp.float32) + fc2_ref[WHID:WHID + 1, :]
    x3 = x2 + o

    out_ref[0] = x3


# ----------------------------------------------------------------------------- wrapper
def block_up_forward(x_nchw, packed):
    """x_nchw: (B, dim, H, W) f32 -> (B, dim, H, W) f32.  packed: slabs from pack_params."""
    B, C, H, W = x_nchw.shape
    WC = W * C
    assert WC % 128 == 0 and H % 8 == 0 and (C & (C - 1)) == 0, \
        "lane-dense layout needs W*C % 128 == 0, H % 8 == 0, C a power of two"

    x = jnp.transpose(x_nchw, (0, 2, 3, 1)).astype(jnp.float32).reshape(B, H, WC)
    conv_slab, mm_slab, fc2_slab = packed["conv"], packed["mm"], packed["fc2"]
    kern = functools.partial(block_up_kernel, H=H, W=W, C=C)

    out = pl.pallas_call(
        kern,
        out_shape=jax.ShapeDtypeStruct((B, H, WC), jnp.float32),
        grid=(B,),                                               # one image per grid step
        in_specs=[
            pl.BlockSpec((1, H, WC), lambda b: (b, 0, 0)),       # lane-dense image block
            pl.BlockSpec(conv_slab.shape, lambda b: (0, 0)),
            pl.BlockSpec(mm_slab.shape, lambda b: (0, 0)),
            pl.BlockSpec(fc2_slab.shape, lambda b: (0, 0)),
        ],
        out_specs=pl.BlockSpec((1, H, WC), lambda b: (b, 0, 0)), # 128-lane unmasked stores
        compiler_params=pltpu.CompilerParams(
            dimension_semantics=("parallel",)),                  # v7x: batch over 2 TCs
    )(x, conv_slab, mm_slab, fc2_slab)

    return jnp.transpose(out.reshape(B, H, W, C), (0, 3, 1, 2))  # back to NCHW


# ----------------------------------------------------------------------------- params
def init_params(key, dim, mlp_ratio=4):
    """Deterministic synthetic parameters (torch-equivalent layouts).

      pos_w (9,C)     == Conv2d(dim,dim,3,groups=dim).weight with w[ky*3+kx, c] = W[c,0,ky,kx]
      attn_w1 (C,C)   == Conv2d(dim,dim,1).weight transposed (x @ W)
      attn_dww (25,C) == Conv2d(dim,dim,5,groups=dim).weight
      fc1_w (C,4C)    == Linear(dim,4*dim).weight transposed; fc2_w (4C,C) likewise.
    """
    hid = int(mlp_ratio * dim)
    ks = jax.random.split(key, 16)

    def n(k, shape, s):
        return (s * jax.random.normal(k, shape)).astype(jnp.float32)

    return dict(
        pos_w=n(ks[0], (9, dim), 0.2), pos_b=n(ks[1], (1, dim), 0.05),
        ln1_g=(1.0 + n(ks[2], (1, dim), 0.1)), ln1_b=n(ks[3], (1, dim), 0.05),
        attn_w1=n(ks[4], (dim, dim), 0.2), attn_b1=n(ks[5], (1, dim), 0.05),
        attn_dww=n(ks[6], (25, dim), 0.2), attn_dwb=n(ks[7], (1, dim), 0.05),
        attn_w2=n(ks[8], (dim, dim), 0.2), attn_b2=n(ks[9], (1, dim), 0.05),
        ln2_g=(1.0 + n(ks[10], (1, dim), 0.1)), ln2_b=n(ks[11], (1, dim), 0.05),
        fc1_w=n(ks[12], (dim, hid), 0.2), fc1_b=n(ks[13], (1, hid), 0.05),
        fc2_w=n(ks[14], (hid, dim), 0.2), fc2_b=n(ks[15], (1, dim), 0.05),
    )


def pack_params(p, W):
    """One-time offline prep for the lane-dense kernel:
       - fold LN gamma/beta into the following linears (LN(x)@M+c == norm(x)@(diag(g)M)+(b@M+c)),
       - tile depthwise taps / biases across the W pixel groups,
       - expand per-pixel 1x1 / linear weights to block-diagonal form (kron with I_W),
       - pack everything into 3 lane-dense slabs."""
    eye = jnp.eye(W, dtype=jnp.float32)
    tile = lambda a: jnp.tile(a, (1, W))

    w1f = p["ln1_g"].reshape(-1, 1) * p["attn_w1"]
    b1f = p["attn_b1"] + p["ln1_b"] @ p["attn_w1"]
    fc1f = p["ln2_g"].reshape(-1, 1) * p["fc1_w"]
    fc1bf = p["fc1_b"] + p["ln2_b"] @ p["fc1_w"]

    conv_slab = jnp.concatenate(
        [tile(p["pos_w"]), tile(p["pos_b"]),
         tile(p["attn_dww"]), tile(p["attn_dwb"])], axis=0).astype(jnp.float32)   # (36, W*C)

    mm_w = jnp.concatenate([jnp.kron(eye, w1f),              # (W*C, W*C)
                            jnp.kron(eye, p["attn_w2"]),     # (W*C, W*C)
                            jnp.kron(eye, fc1f)], axis=1)    # (W*C, W*hid)
    mm_b = jnp.concatenate([tile(b1f), tile(p["attn_b2"]), tile(fc1bf)], axis=1)
    mm_slab = jnp.concatenate([mm_w, mm_b], axis=0).astype(jnp.float32)

    fc2_slab = jnp.concatenate([jnp.kron(eye, p["fc2_w"]),
                                tile(p["fc2_b"])], axis=0).astype(jnp.float32)    # (W*hid+1, W*C)

    return {"conv": conv_slab, "mm": mm_slab, "fc2": fc2_slab}


# ----------------------------------------------------------------------------- pure-JAX reference
def _layer_norm_ref(t, g, b, eps=1e-6):
    mu = jnp.mean(t, axis=-1, keepdims=True)
    var = jnp.mean(jnp.square(t - mu), axis=-1, keepdims=True)
    return (t - mu) * jax.lax.rsqrt(var + eps) * g + b


def block_up_reference(x_nchw, p):
    B, C, H, W = x_nchw.shape
    hp = jax.lax.Precision.HIGHEST
    x = jnp.transpose(x_nchw, (0, 2, 3, 1)).astype(jnp.float32)

    xp = jnp.pad(x, ((0, 0), (1, 1), (1, 1), (0, 0)))
    acc = jnp.zeros_like(x)
    for ky in range(3):
        for kx in range(3):
            acc = acc + xp[:, ky:ky + H, kx:kx + W, :] * p["pos_w"][ky * 3 + kx]
    x = x + acc + p["pos_b"][0]

    t = _layer_norm_ref(x, p["ln1_g"][0], p["ln1_b"][0])
    t = jnp.einsum("bhwc,cd->bhwd", t, p["attn_w1"], precision=hp) + p["attn_b1"][0]
    tp = jnp.pad(t, ((0, 0), (2, 2), (2, 2), (0, 0)))
    acc = jnp.zeros_like(t)
    for ky in range(5):
        for kx in range(5):
            acc = acc + tp[:, ky:ky + H, kx:kx + W, :] * p["attn_dww"][ky * 5 + kx]
    acc = acc + p["attn_dwb"][0]
    t = jnp.einsum("bhwc,cd->bhwd", acc, p["attn_w2"], precision=hp) + p["attn_b2"][0]
    x = x + t

    t = _layer_norm_ref(x, p["ln2_g"][0], p["ln2_b"][0])
    h = jnp.einsum("bhwc,cd->bhwd", t, p["fc1_w"], precision=hp) + p["fc1_b"][0]
    h = 0.5 * h * (1.0 + jax.lax.erf(h * (1.0 / math.sqrt(2.0))))
    t = jnp.einsum("bhwc,cd->bhwd", h, p["fc2_w"], precision=hp) + p["fc2_b"][0]
    x = x + t

    return jnp.transpose(x, (0, 3, 1, 2))


# ----------------------------------------------------------------------------- main
if __name__ == "__main__":
    B, dim, H, W = 2, 16, 8, 8              # W * dim = 128 -> fully lane-dense layout
    key = jax.random.PRNGKey(0)
    k_x, k_p = jax.random.split(key)

    x = jax.random.normal(k_x, (B, dim, H, W), dtype=jnp.float32)   # NCHW like the torch module
    params = init_params(k_p, dim)
    packed = pack_params(params, W)                                 # offline weight prep

    fwd = jax.jit(block_up_forward)
    y = jax.block_until_ready(fwd(x, packed))

    y_ref = block_up_reference(x, params)

    assert y.shape == (B, dim, H, W), y.shape
    assert bool(jnp.all(jnp.isfinite(y)))
    err = float(jnp.max(jnp.abs(y - y_ref)))
    assert bool(jnp.allclose(y, y_ref, atol=2e-3, rtol=2e-3)), err
    print("KERNEL_OK")
</pallas_src>

<mosaic_0001>
module attributes {stable_mosaic.version = 11 : i64} {
  func.func @block_up_kernel(%arg0: i32, %arg1: memref<1x8x128xf32, #tpu.memory_space<vmem>>, %arg2: memref<36x128xf32, #tpu.memory_space<vmem>>, %arg3: memref<129x768xf32, #tpu.memory_space<vmem>>, %arg4: memref<513x128xf32, #tpu.memory_space<vmem>>, %arg5: memref<1x8x128xf32, #tpu.memory_space<vmem>>) attributes {dimension_semantics = [#tpu.dimension_semantics<parallel>], iteration_bounds = array<i64: 2>, scalar_prefetch = 0 : i64, scratch_operands = 0 : i64, tpu.core_type = #tpu.core_type<tc>, window_params = [{transform_indices = @transform_0, window_bounds = array<i64: 1, 8, 128>}, {pipeline_mode = #tpu.pipeline_mode<synchronous>, transform_indices = @transform_1, window_bounds = array<i64: 36, 128>}, {pipeline_mode = #tpu.pipeline_mode<synchronous>, transform_indices = @transform_2, window_bounds = array<i64: 129, 768>}, {pipeline_mode = #tpu.pipeline_mode<synchronous>, transform_indices = @transform_3, window_bounds = array<i64: 513, 128>}, {transform_indices = @transform_4, window_bounds = array<i64: 1, 8, 128>}]} {
    %0 = tpu.iota {dimensions = array<i32: 1>} : vector<8x128xi32>
    %1 = tpu.iota {dimensions = array<i32: 0>} : vector<8x128xi32>
    %c15_i32 = arith.constant 15 : i32
    %2 = vector.broadcast %c15_i32 : i32 to vector<8x128xi32>
    %3 = arith.andi %0, %2 : vector<8x128xi32>
    %c0 = arith.constant 0 : index
    %c0_0 = arith.constant 0 : index
    %c0_1 = arith.constant 0 : index
    %4 = vector.load %arg1[%c0, %c0_0, %c0_1] : memref<1x8x128xf32, #tpu.memory_space<vmem>>, vector<1x8x128xf32>
    %5 = vector.shape_cast %4 : vector<1x8x128xf32> to vector<8x128xf32>
    %c1_i32 = arith.constant 1 : i32
    %6 = tpu.dynamic_rotate %5 by %c1_i32 dim 0 : vector<8x128xf32>, i32 -> vector<8x128xf32>
    %c1_i32_2 = arith.constant 1 : i32
    %7 = vector.broadcast %c1_i32_2 : i32 to vector<8x128xi32>
    %8 = arith.cmpi sge, %1, %7 : vector<8x128xi32>
    %cst = arith.constant 0.000000e+00 : f32
    %9 = vector.broadcast %cst : f32 to vector<8x128xf32>
    %10 = arith.select %8, %6, %9 : vector<8x128xi1>, vector<8x128xf32>
    %c7_i32 = arith.constant 7 : i32
    %11 = tpu.dynamic_rotate %5 by %c7_i32 dim 0 : vector<8x128xf32>, i32 -> vector<8x128xf32>
    %c7_i32_3 = arith.constant 7 : i32
    %12 = vector.broadcast %c7_i32_3 : i32 to vector<8x128xi32>
    %13 = arith.cmpi slt, %1, %12 : vector<8x128xi32>
    %cst_4 = arith.constant 0.000000e+00 : f32
    %14 = vector.broadcast %cst_4 : f32 to vector<8x128xf32>
    %15 = arith.select %13, %11, %14 : vector<8x128xi1>, vector<8x128xf32>
    %c16_i32 = arith.constant 16 : i32
    %16 = tpu.dynamic_rotate %10 by %c16_i32 dim 1 : vector<8x128xf32>, i32 -> vector<8x128xf32>
    %c16_i32_5 = arith.constant 16 : i32
    %17 = vector.broadcast %c16_i32_5 : i32 to vector<8x128xi32>
    %18 = arith.cmpi sge, %0, %17 : vector<8x128xi32>
    %cst_6 = arith.constant 0.000000e+00 : f32
    %19 = vector.broadcast %cst_6 : f32 to vector<8x128xf32>
    %20 = arith.select %18, %16, %19 : vector<8x128xi1>, vector<8x128xf32>
    %c0_7 = arith.constant 0 : index
    %c0_8 = arith.constant 0 : index
    %21 = vector.load %arg2[%c0_7, %c0_8] : memref<36x128xf32, #tpu.memory_space<vmem>>, vector<1x128xf32>
    %22 = vector.broadcast %21 : vector<1x128xf32> to vector<8x128xf32>
    %23 = arith.mulf %20, %22 : vector<8x128xf32>
    %c1 = arith.constant 1 : index
    %c0_9 = arith.constant 0 : index
    %24 = vector.load %arg2[%c1, %c0_9] : memref<36x128xf32, #tpu.memory_space<vmem>>, vector<1x128xf32>
    %25 = vector.broadcast %24 : vector<1x128xf32> to vector<8x128xf32>
    %26 = arith.mulf %10, %25 : vector<8x128xf32>
    %27 = arith.addf %23, %26 : vector<8x128xf32>
    %c112_i32 = arith.constant 112 : i32
    %28 = tpu.dynamic_rotate %10 by %c112_i32 dim 1 : vector<8x128xf32>, i32 -> vector<8x128xf32>
    %c112_i32_10 = arith.constant 112 : i32
    %29 = vector.broadcast %c112_i32_10 : i32 to vector<8x128xi32>
    %30 = arith.cmpi slt, %0, %29 : vector<8x128xi32>
    %cst_11 = arith.constant 0.000000e+00 : f32
    %31 = vector.broadcast %cst_11 : f32 to vector<8x128xf32>
    %32 = arith.select %30, %28, %31 : vector<8x128xi1>, vector<8x128xf32>
    %c2 = arith.constant 2 : index
    %c0_12 = arith.constant 0 : index
    %33 = vector.load %arg2[%c2, %c0_12] : memref<36x128xf32, #tpu.memory_space<vmem>>, vector<1x128xf32>
    %34 = vector.broadcast %33 : vector<1x128xf32> to vector<8x128xf32>
    %35 = arith.mulf %32, %34 : vector<8x128xf32>
    %36 = arith.addf %27, %35 : vector<8x128xf32>
    %c16_i32_13 = arith.constant 16 : i32
    %37 = tpu.dynamic_rotate %5 by %c16_i32_13 dim 1 : vector<8x128xf32>, i32 -> vector<8x128xf32>
    %c16_i32_14 = arith.constant 16 : i32
    %38 = vector.broadcast %c16_i32_14 : i32 to vector<8x128xi32>
    %39 = arith.cmpi sge, %0, %38 : vector<8x128xi32>
    %cst_15 = arith.constant 0.000000e+00 : f32
    %40 = vector.broadcast %cst_15 : f32 to vector<8x128xf32>
    %41 = arith.select %39, %37, %40 : vector<8x128xi1>, vector<8x128xf32>
    %c3 = arith.constant 3 : index
    %c0_16 = arith.constant 0 : index
    %42 = vector.load %arg2[%c3, %c0_16] : memref<36x128xf32, #tpu.memory_space<vmem>>, vector<1x128xf32>
    %43 = vector.broadcast %42 : vector<1x128xf32> to vector<8x128xf32>
    %44 = arith.mulf %41, %43 : vector<8x128xf32>
    %45 = arith.addf %36, %44 : vector<8x128xf32>
    %c4 = arith.constant 4 : index
    %c0_17 = arith.constant 0 : index
    %46 = vector.load %arg2[%c4, %c0_17] : memref<36x128xf32, #tpu.memory_space<vmem>>, vector<1x128xf32>
    %47 = vector.broadcast %46 : vector<1x128xf32> to vector<8x128xf32>
    %48 = arith.mulf %5, %47 : vector<8x128xf32>
    %49 = arith.addf %45, %48 : vector<8x128xf32>
    %c112_i32_18 = arith.constant 112 : i32
    %50 = tpu.dynamic_rotate %5 by %c112_i32_18 dim 1 : vector<8x128xf32>, i32 -> vector<8x128xf32>
    %c112_i32_19 = arith.constant 112 : i32
    %51 = vector.broadcast %c112_i32_19 : i32 to vector<8x128xi32>
    %52 = arith.cmpi slt, %0, %51 : vector<8x128xi32>
    %cst_20 = arith.constant 0.000000e+00 : f32
    %53 = vector.broadcast %cst_20 : f32 to vector<8x128xf32>
    %54 = arith.select %52, %50, %53 : vector<8x128xi1>, vector<8x128xf32>
    %c5 = arith.constant 5 : index
    %c0_21 = arith.constant 0 : index
    %55 = vector.load %arg2[%c5, %c0_21] : memref<36x128xf32, #tpu.memory_space<vmem>>, vector<1x128xf32>
    %56 = vector.broadcast %55 : vector<1x128xf32> to vector<8x128xf32>
    %57 = arith.mulf %54, %56 : vector<8x128xf32>
    %58 = arith.addf %49, %57 : vector<8x128xf32>
    %c16_i32_22 = arith.constant 16 : i32
    %59 = tpu.dynamic_rotate %15 by %c16_i32_22 dim 1 : vector<8x128xf32>, i32 -> vector<8x128xf32>
    %c16_i32_23 = arith.constant 16 : i32
    %60 = vector.broadcast %c16_i32_23 : i32 to vector<8x128xi32>
    %61 = arith.cmpi sge, %0, %60 : vector<8x128xi32>
    %cst_24 = arith.constant 0.000000e+00 : f32
    %62 = vector.broadcast %cst_24 : f32 to vector<8x128xf32>
    %63 = arith.select %61, %59, %62 : vector<8x128xi1>, vector<8x128xf32>
    %c6 = arith.constant 6 : index
    %c0_25 = arith.constant 0 : index
    %64 = vector.load %arg2[%c6, %c0_25] : memref<36x128xf32, #tpu.memory_space<vmem>>, vector<1x128xf32>
    %65 = vector.broadcast %64 : vector<1x128xf32> to vector<8x128xf32>
    %66 = arith.mulf %63, %65 : vector<8x128xf32>
    %67 = arith.addf %58, %66 : vector<8x128xf32>
    %c7 = arith.constant 7 : index
    %c0_26 = arith.constant 0 : index
    %68 = vector.load %arg2[%c7, %c0_26] : memref<36x128xf32, #tpu.memory_space<vmem>>, vector<1x128xf32>
    %69 = vector.broadcast %68 : vector<1x128xf32> to vector<8x128xf32>
    %70 = arith.mulf %15, %69 : vector<8x128xf32>
    %71 = arith.addf %67, %70 : vector<8x128xf32>
    %c112_i32_27 = arith.constant 112 : i32
    %72 = tpu.dynamic_rotate %15 by %c112_i32_27 dim 1 : vector<8x128xf32>, i32 -> vector<8x128xf32>
    %c112_i32_28 = arith.constant 112 : i32
    %73 = vector.broadcast %c112_i32_28 : i32 to vector<8x128xi32>
    %74 = arith.cmpi slt, %0, %73 : vector<8x128xi32>
    %cst_29 = arith.constant 0.000000e+00 : f32
    %75 = vector.broadcast %cst_29 : f32 to vector<8x128xf32>
    %76 = arith.select %74, %72, %75 : vector<8x128xi1>, vector<8x128xf32>
    %c8 = arith.constant 8 : index
    %c0_30 = arith.constant 0 : index
    %77 = vector.load %arg2[%c8, %c0_30] : memref<36x128xf32, #tpu.memory_space<vmem>>, vector<1x128xf32>
    %78 = vector.broadcast %77 : vector<1x128xf32> to vector<8x128xf32>
    %79 = arith.mulf %76, %78 : vector<8x128xf32>
    %80 = arith.addf %71, %79 : vector<8x128xf32>
    %81 = arith.addf %5, %80 : vector<8x128xf32>
    %c9 = arith.constant 9 : index
    %c0_31 = arith.constant 0 : index
    %82 = vector.load %arg2[%c9, %c0_31] : memref<36x128xf32, #tpu.memory_space<vmem>>, vector<1x128xf32>
    %83 = vector.broadcast %82 : vector<1x128xf32> to vector<8x128xf32>
    %84 = arith.addf %81, %83 : vector<8x128xf32>
    %c120_i32 = arith.constant 120 : i32
    %85 = tpu.dynamic_rotate %84 by %c120_i32 dim 1 : vector<8x128xf32>, i32 -> vector<8x128xf32>
    %c8_i32 = arith.constant 8 : i32
    %86 = tpu.dynamic_rotate %84 by %c8_i32 dim 1 : vector<8x128xf32>, i32 -> vector<8x128xf32>
    %c8_i32_32 = arith.constant 8 : i32
    %87 = vector.broadcast %c8_i32_32 : i32 to vector<8x128xi32>
    %88 = arith.andi %3, %87 : vector<8x128xi32>
    %c0_i32 = arith.constant 0 : i32
    %89 = vector.broadcast %c0_i32 : i32 to vector<8x128xi32>
    %90 = arith.cmpi eq, %88, %89 : vector<8x128xi32>
    %91 = arith.select %90, %85, %86 : vector<8x128xi1>, vector<8x128xf32>
    %92 = arith.addf %84, %91 : vector<8x128xf32>
    %c124_i32 = arith.constant 124 : i32
    %93 = tpu.dynamic_rotate %92 by %c124_i32 dim 1 : vector<8x128xf32>, i32 -> vector<8x128xf32>
    %c4_i32 = arith.constant 4 : i32
    %94 = tpu.dynamic_rotate %92 by %c4_i32 dim 1 : vector<8x128xf32>, i32 -> vector<8x128xf32>
    %c4_i32_33 = arith.constant 4 : i32
    %95 = vector.broadcast %c4_i32_33 : i32 to vector<8x128xi32>
    %96 = arith.andi %3, %95 : vector<8x128xi32>
    %c0_i32_34 = arith.constant 0 : i32
    %97 = vector.broadcast %c0_i32_34 : i32 to vector<8x128xi32>
    %98 = arith.cmpi eq, %96, %97 : vector<8x128xi32>
    %99 = arith.select %98, %93, %94 : vector<8x128xi1>, vector<8x128xf32>
    %100 = arith.addf %92, %99 : vector<8x128xf32>
    %c126_i32 = arith.constant 126 : i32
    %101 = tpu.dynamic_rotate %100 by %c126_i32 dim 1 : vector<8x128xf32>, i32 -> vector<8x128xf32>
    %c2_i32 = arith.constant 2 : i32
    %102 = tpu.dynamic_rotate %100 by %c2_i32 dim 1 : vector<8x128xf32>, i32 -> vector<8x128xf32>
    %c2_i32_35 = arith.constant 2 : i32
    %103 = vector.broadcast %c2_i32_35 : i32 to vector<8x128xi32>
    %104 = arith.andi %3, %103 : vector<8x128xi32>
    %c0_i32_36 = arith.constant 0 : i32
    %105 = vector.broadcast %c0_i32_36 : i32 to vector<8x128xi32>
    %106 = arith.cmpi eq, %104, %105 : vector<8x128xi32>
    %107 = arith.select %106, %101, %102 : vector<8x128xi1>, vector<8x128xf32>
    %108 = arith.addf %100, %107 : vector<8x128xf32>
    %c127_i32 = arith.constant 127 : i32
    %109 = tpu.dynamic_rotate %108 by %c127_i32 dim 1 : vector<8x128xf32>, i32 -> vector<8x128xf32>
    %c1_i32_37 = arith.constant 1 : i32
    %110 = tpu.dynamic_rotate %108 by %c1_i32_37 dim 1 : vector<8x128xf32>, i32 -> vector<8x128xf32>
    %c1_i32_38 = arith.constant 1 : i32
    %111 = vector.broadcast %c1_i32_38 : i32 to vector<8x128xi32>
    %112 = arith.andi %3, %111 : vector<8x128xi32>
    %c0_i32_39 = arith.constant 0 : i32
    %113 = vector.broadcast %c0_i32_39 : i32 to vector<8x128xi32>
    %114 = arith.cmpi eq, %112, %113 : vector<8x128xi32>
    %115 = arith.select %114, %109, %110 : vector<8x128xi1>, vector<8x128xf32>
    %116 = arith.addf %108, %115 : vector<8x128xf32>
    %cst_40 = arith.constant 6.250000e-02 : f32
    %117 = vector.broadcast %cst_40 : f32 to vector<8x128xf32>
    %118 = arith.mulf %116, %117 : vector<8x128xf32>
    %119 = arith.subf %84, %118 : vector<8x128xf32>
    %120 = arith.mulf %119, %119 : vector<8x128xf32>
    %c120_i32_41 = arith.constant 120 : i32
    %121 = tpu.dynamic_rotate %120 by %c120_i32_41 dim 1 : vector<8x128xf32>, i32 -> vector<8x128xf32>
    %c8_i32_42 = arith.constant 8 : i32
    %122 = tpu.dynamic_rotate %120 by %c8_i32_42 dim 1 : vector<8x128xf32>, i32 -> vector<8x128xf32>
    %c8_i32_43 = arith.constant 8 : i32
    %123 = vector.broadcast %c8_i32_43 : i32 to vector<8x128xi32>
    %124 = arith.andi %3, %123 : vector<8x128xi32>
    %c0_i32_44 = arith.constant 0 : i32
    %125 = vector.broadcast %c0_i32_44 : i32 to vector<8x128xi32>
    %126 = arith.cmpi eq, %124, %125 : vector<8x128xi32>
    %127 = arith.select %126, %121, %122 : vector<8x128xi1>, vector<8x128xf32>
    %128 = arith.addf %120, %127 : vector<8x128xf32>
    %c124_i32_45 = arith.constant 124 : i32
    %129 = tpu.dynamic_rotate %128 by %c124_i32_45 dim 1 : vector<8x128xf32>, i32 -> vector<8x128xf32>
    %c4_i32_46 = arith.constant 4 : i32
    %130 = tpu.dynamic_rotate %128 by %c4_i32_46 dim 1 : vector<8x128xf32>, i32 -> vector<8x128xf32>
    %c4_i32_47 = arith.constant 4 : i32
    %131 = vector.broadcast %c4_i32_47 : i32 to vector<8x128xi32>
    %132 = arith.andi %3, %131 : vector<8x128xi32>
    %c0_i32_48 = arith.constant 0 : i32
    %133 = vector.broadcast %c0_i32_48 : i32 to vector<8x128xi32>
    %134 = arith.cmpi eq, %132, %133 : vector<8x128xi32>
    %135 = arith.select %134, %129, %130 : vector<8x128xi1>, vector<8x128xf32>
    %136 = arith.addf %128, %135 : vector<8x128xf32>
    %c126_i32_49 = arith.constant 126 : i32
    %137 = tpu.dynamic_rotate %136 by %c126_i32_49 dim 1 : vector<8x128xf32>, i32 -> vector<8x128xf32>
    %c2_i32_50 = arith.constant 2 : i32
    %138 = tpu.dynamic_rotate %136 by %c2_i32_50 dim 1 : vector<8x128xf32>, i32 -> vector<8x128xf32>
    %c2_i32_51 = arith.constant 2 : i32
    %139 = vector.broadcast %c2_i32_51 : i32 to vector<8x128xi32>
    %140 = arith.andi %3, %139 : vector<8x128xi32>
    %c0_i32_52 = arith.constant 0 : i32
    %141 = vector.broadcast %c0_i32_52 : i32 to vector<8x128xi32>
    %142 = arith.cmpi eq, %140, %141 : vector<8x128xi32>
    %143 = arith.select %142, %137, %138 : vector<8x128xi1>, vector<8x128xf32>
    %144 = arith.addf %136, %143 : vector<8x128xf32>
    %c127_i32_53 = arith.constant 127 : i32
    %145 = tpu.dynamic_rotate %144 by %c127_i32_53 dim 1 : vector<8x128xf32>, i32 -> vector<8x128xf32>
    %c1_i32_54 = arith.constant 1 : i32
    %146 = tpu.dynamic_rotate %144 by %c1_i32_54 dim 1 : vector<8x128xf32>, i32 -> vector<8x128xf32>
    %c1_i32_55 = arith.constant 1 : i32
    %147 = vector.broadcast %c1_i32_55 : i32 to vector<8x128xi32>
    %148 = arith.andi %3, %147 : vector<8x128xi32>
    %c0_i32_56 = arith.constant 0 : i32
    %149 = vector.broadcast %c0_i32_56 : i32 to vector<8x128xi32>
    %150 = arith.cmpi eq, %148, %149 : vector<8x128xi32>
    %151 = arith.select %150, %145, %146 : vector<8x128xi1>, vector<8x128xf32>
    %152 = arith.addf %144, %151 : vector<8x128xf32>
    %cst_57 = arith.constant 6.250000e-02 : f32
    %153 = vector.broadcast %cst_57 : f32 to vector<8x128xf32>
    %154 = arith.mulf %152, %153 : vector<8x128xf32>
    %cst_58 = arith.constant 9.99999997E-7 : f32
    %155 = vector.broadcast %cst_58 : f32 to vector<8x128xf32>
    %156 = arith.addf %154, %155 : vector<8x128xf32>
    %157 = math.rsqrt %156 : vector<8x128xf32>
    %158 = arith.mulf %119, %157 : vector<8x128xf32>
    %c0_59 = arith.constant 0 : index
    %c0_60 = arith.constant 0 : index
    %159 = vector.load %arg3[%c0_59, %c0_60] : memref<129x768xf32, #tpu.memory_space<vmem>>, vector<128x128xf32>
    %cst_61 = arith.constant dense<0.000000e+00> : vector<8x128xf32>
    %160 = tpu.matmul %158, %159, %cst_61 {dimension_numbers = #tpu.dot_dimension_numbers<[1], [0], [0], [1], [0, 0, 1, 1], [], []>} : vector<8x128xf32>, vector<128x128xf32>, vector<8x128xf32> -> vector<8x128xf32>
    %c128 = arith.constant 128 : index
    %c0_62 = arith.constant 0 : index
    %161 = vector.load %arg3[%c128, %c0_62] : memref<129x768xf32, #tpu.memory_space<vmem>>, vector<1x128xf32>
    %162 = vector.broadcast %161 : vector<1x128xf32> to vector<8x128xf32>
    %163 = arith.addf %160, %162 : vector<8x128xf32>
    %c2_i32_63 = arith.constant 2 : i32
    %164 = tpu.dynamic_rotate %163 by %c2_i32_63 dim 0 : vector<8x128xf32>, i32 -> vector<8x128xf32>
    %c2_i32_64 = arith.constant 2 : i32
    %165 = vector.broadcast %c2_i32_64 : i32 to vector<8x128xi32>
    %166 = arith.cmpi sge, %1, %165 : vector<8x128xi32>
    %cst_65 = arith.constant 0.000000e+00 : f32
    %167 = vector.broadcast %cst_65 : f32 to vector<8x128xf32>
    %168 = arith.select %166, %164, %167 : vector<8x128xi1>, vector<8x128xf32>
    %c1_i32_66 = arith.constant 1 : i32
    %169 = tpu.dynamic_rotate %163 by %c1_i32_66 dim 0 : vector<8x128xf32>, i32 -> vector<8x128xf32>
    %c1_i32_67 = arith.constant 1 : i32
    %170 = vector.broadcast %c1_i32_67 : i32 to vector<8x128xi32>
    %171 = arith.cmpi sge, %1, %170 : vector<8x128xi32>
    %cst_68 = arith.constant 0.000000e+00 : f32
    %172 = vector.broadcast %cst_68 : f32 to vector<8x128xf32>
    %173 = arith.select %171, %169, %172 : vector<8x128xi1>, vector<8x128xf32>
    %c7_i32_69 = arith.constant 7 : i32
    %174 = tpu.dynamic_rotate %163 by %c7_i32_69 dim 0 : vector<8x128xf32>, i32 -> vector<8x128xf32>
    %c7_i32_70 = arith.constant 7 : i32
    %175 = vector.broadcast %c7_i32_70 : i32 to vector<8x128xi32>
    %176 = arith.cmpi slt, %1, %175 : vector<8x128xi32>
    %cst_71 = arith.constant 0.000000e+00 : f32
    %177 = vector.broadcast %cst_71 : f32 to vector<8x128xf32>
    %178 = arith.select %176, %174, %177 : vector<8x128xi1>, vector<8x128xf32>
    %c6_i32 = arith.constant 6 : i32
    %179 = tpu.dynamic_rotate %163 by %c6_i32 dim 0 : vector<8x128xf32>, i32 -> vector<8x128xf32>
    %c6_i32_72 = arith.constant 6 : i32
    %180 = vector.broadcast %c6_i32_72 : i32 to vector<8x128xi32>
    %181 = arith.cmpi slt, %1, %180 : vector<8x128xi32>
    %cst_73 = arith.constant 0.000000e+00 : f32
    %182 = vector.broadcast %cst_73 : f32 to vector<8x128xf32>
    %183 = arith.select %181, %179, %182 : vector<8x128xi1>, vector<8x128xf32>
    %c32_i32 = arith.constant 32 : i32
    %184 = tpu.dynamic_rotate %168 by %c32_i32 dim 1 : vector<8x128xf32>, i32 -> vector<8x128xf32>
    %c32_i32_74 = arith.constant 32 : i32
    %185 = vector.broadcast %c32_i32_74 : i32 to vector<8x128xi32>
    %186 = arith.cmpi sge, %0, %185 : vector<8x128xi32>
    %cst_75 = arith.constant 0.000000e+00 : f32
    %187 = vector.broadcast %cst_75 : f32 to vector<8x128xf32>
    %188 = arith.select %186, %184, %187 : vector<8x128xi1>, vector<8x128xf32>
    %c10 = arith.constant 10 : index
    %c0_76 = arith.constant 0 : index
    %189 = vector.load %arg2[%c10, %c0_76] : memref<36x128xf32, #tpu.memory_space<vmem>>, vector<1x128xf32>
    %190 = vector.broadcast %189 : vector<1x128xf32> to vector<8x128xf32>
    %191 = arith.mulf %188, %190 : vector<8x128xf32>
    %c16_i32_77 = arith.constant 16 : i32
    %192 = tpu.dynamic_rotate %168 by %c16_i32_77 dim 1 : vector<8x128xf32>, i32 -> vector<8x128xf32>
    %c16_i32_78 = arith.constant 16 : i32
    %193 = vector.broadcast %c16_i32_78 : i32 to vector<8x128xi32>
    %194 = arith.cmpi sge, %0, %193 : vector<8x128xi32>
    %cst_79 = arith.constant 0.000000e+00 : f32
    %195 = vector.broadcast %cst_79 : f32 to vector<8x128xf32>
    %196 = arith.select %194, %192, %195 : vector<8x128xi1>, vector<8x128xf32>
    %c11 = arith.constant 11 : index
    %c0_80 = arith.constant 0 : index
    %197 = vector.load %arg2[%c11, %c0_80] : memref<36x128xf32, #tpu.memory_space<vmem>>, vector<1x128xf32>
    %198 = vector.broadcast %197 : vector<1x128xf32> to vector<8x128xf32>
    %199 = arith.mulf %196, %198 : vector<8x128xf32>
    %200 = arith.addf %191, %199 : vector<8x128xf32>
    %c12 = arith.constant 12 : index
    %c0_81 = arith.constant 0 : index
    %201 = vector.load %arg2[%c12, %c0_81] : memref<36x128xf32, #tpu.memory_space<vmem>>, vector<1x128xf32>
    %202 = vector.broadcast %201 : vector<1x128xf32> to vector<8x128xf32>
    %203 = arith.mulf %168, %202 : vector<8x128xf32>
    %204 = arith.addf %200, %203 : vector<8x128xf32>
    %c112_i32_82 = arith.constant 112 : i32
    %205 = tpu.dynamic_rotate %168 by %c112_i32_82 dim 1 : vector<8x128xf32>, i32 -> vector<8x128xf32>
    %c112_i32_83 = arith.constant 112 : i32
    %206 = vector.broadcast %c112_i32_83 : i32 to vector<8x128xi32>
    %207 = arith.cmpi slt, %0, %206 : vector<8x128xi32>
    %cst_84 = arith.constant 0.000000e+00 : f32
    %208 = vector.broadcast %cst_84 : f32 to vector<8x128xf32>
    %209 = arith.select %207, %205, %208 : vector<8x128xi1>, vector<8x128xf32>
    %c13 = arith.constant 13 : index
    %c0_85 = arith.constant 0 : index
    %210 = vector.load %arg2[%c13, %c0_85] : memref<36x128xf32, #tpu.memory_space<vmem>>, vector<1x128xf32>
    %211 = vector.broadcast %210 : vector<1x128xf32> to vector<8x128xf32>
    %212 = arith.mulf %209, %211 : vector<8x128xf32>
    %213 = arith.addf %204, %212 : vector<8x128xf32>
    %c96_i32 = arith.constant 96 : i32
    %214 = tpu.dynamic_rotate %168 by %c96_i32 dim 1 : vector<8x128xf32>, i32 -> vector<8x128xf32>
    %c96_i32_86 = arith.constant 96 : i32
    %215 = vector.broadcast %c96_i32_86 : i32 to vector<8x128xi32>
    %216 = arith.cmpi slt, %0, %215 : vector<8x128xi32>
    %cst_87 = arith.constant 0.000000e+00 : f32
    %217 = vector.broadcast %cst_87 : f32 to vector<8x128xf32>
    %218 = arith.select %216, %214, %217 : vector<8x128xi1>, vector<8x128xf32>
    %c14 = arith.constant 14 : index
    %c0_88 = arith.constant 0 : index
    %219 = vector.load %arg2[%c14, %c0_88] : memref<36x128xf32, #tpu.memory_space<vmem>>, vector<1x128xf32>
    %220 = vector.broadcast %219 : vector<1x128xf32> to vector<8x128xf32>
    %221 = arith.mulf %218, %220 : vector<8x128xf32>
    %222 = arith.addf %213, %221 : vector<8x128xf32>
    %c32_i32_89 = arith.constant 32 : i32
    %223 = tpu.dynamic_rotate %173 by %c32_i32_89 dim 1 : vector<8x128xf32>, i32 -> vector<8x128xf32>
    %c32_i32_90 = arith.constant 32 : i32
    %224 = vector.broadcast %c32_i32_90 : i32 to vector<8x128xi32>
    %225 = arith.cmpi sge, %0, %224 : vector<8x128xi32>
    %cst_91 = arith.constant 0.000000e+00 : f32
    %226 = vector.broadcast %cst_91 : f32 to vector<8x128xf32>
    %227 = arith.select %225, %223, %226 : vector<8x128xi1>, vector<8x128xf32>
    %c15 = arith.constant 15 : index
    %c0_92 = arith.constant 0 : index
    %228 = vector.load %arg2[%c15, %c0_92] : memref<36x128xf32, #tpu.memory_space<vmem>>, vector<1x128xf32>
    %229 = vector.broadcast %228 : vector<1x128xf32> to vector<8x128xf32>
    %230 = arith.mulf %227, %229 : vector<8x128xf32>
    %231 = arith.addf %222, %230 : vector<8x128xf32>
    %c16_i32_93 = arith.constant 16 : i32
    %232 = tpu.dynamic_rotate %173 by %c16_i32_93 dim 1 : vector<8x128xf32>, i32 -> vector<8x128xf32>
    %c16_i32_94 = arith.constant 16 : i32
    %233 = vector.broadcast %c16_i32_94 : i32 to vector<8x128xi32>
    %234 = arith.cmpi sge, %0, %233 : vector<8x128xi32>
    %cst_95 = arith.constant 0.000000e+00 : f32
    %235 = vector.broadcast %cst_95 : f32 to vector<8x128xf32>
    %236 = arith.select %234, %232, %235 : vector<8x128xi1>, vector<8x128xf32>
    %c16 = arith.constant 16 : index
    %c0_96 = arith.constant 0 : index
    %237 = vector.load %arg2[%c16, %c0_96] : memref<36x128xf32, #tpu.memory_space<vmem>>, vector<1x128xf32>
    %238 = vector.broadcast %237 : vector<1x128xf32> to vector<8x128xf32>
    %239 = arith.mulf %236, %238 : vector<8x128xf32>
    %240 = arith.addf %231, %239 : vector<8x128xf32>
    %c17 = arith.constant 17 : index
    %c0_97 = arith.constant 0 : index
    %241 = vector.load %arg2[%c17, %c0_97] : memref<36x128xf32, #tpu.memory_space<vmem>>, vector<1x128xf32>
    %242 = vector.broadcast %241 : vector<1x128xf32> to vector<8x128xf32>
    %243 = arith.mulf %173, %242 : vector<8x128xf32>
    %244 = arith.addf %240, %243 : vector<8x128xf32>
    %c112_i32_98 = arith.constant 112 : i32
    %245 = tpu.dynamic_rotate %173 by %c112_i32_98 dim 1 : vector<8x128xf32>, i32 -> vector<8x128xf32>
    %c112_i32_99 = arith.constant 112 : i32
    %246 = vector.broadcast %c112_i32_99 : i32 to vector<8x128xi32>
    %247 = arith.cmpi slt, %0, %246 : vector<8x128xi32>
    %cst_100 = arith.constant 0.000000e+00 : f32
    %248 = vector.broadcast %cst_100 : f32 to vector<8x128xf32>
    %249 = arith.select %247, %245, %248 : vector<8x128xi1>, vector<8x128xf32>
    %c18 = arith.constant 18 : index
    %c0_101 = arith.constant 0 : index
    %250 = vector.load %arg2[%c18, %c0_101] : memref<36x128xf32, #tpu.memory_space<vmem>>, vector<1x128xf32>
    %251 = vector.broadcast %250 : vector<1x128xf32> to vector<8x128xf32>
    %252 = arith.mulf %249, %251 : vector<8x128xf32>
    %253 = arith.addf %244, %252 : vector<8x128xf32>
    %c96_i32_102 = arith.constant 96 : i32
    %254 = tpu.dynamic_rotate %173 by %c96_i32_102 dim 1 : vector<8x128xf32>, i32 -> vector<8x128xf32>
    %c96_i32_103 = arith.constant 96 : i32
    %255 = vector.broadcast %c96_i32_103 : i32 to vector<8x128xi32>
    %256 = arith.cmpi slt, %0, %255 : vector<8x128xi32>
    %cst_104 = arith.constant 0.000000e+00 : f32
    %257 = vector.broadcast %cst_104 : f32 to vector<8x128xf32>
    %258 = arith.select %256, %254, %257 : vector<8x128xi1>, vector<8x128xf32>
    %c19 = arith.constant 19 : index
    %c0_105 = arith.constant 0 : index
    %259 = vector.load %arg2[%c19, %c0_105] : memref<36x128xf32, #tpu.memory_space<vmem>>, vector<1x128xf32>
    %260 = vector.broadcast %259 : vector<1x128xf32> to vector<8x128xf32>
    %261 = arith.mulf %258, %260 : vector<8x128xf32>
    %262 = arith.addf %253, %261 : vector<8x128xf32>
    %c32_i32_106 = arith.constant 32 : i32
    %263 = tpu.dynamic_rotate %163 by %c32_i32_106 dim 1 : vector<8x128xf32>, i32 -> vector<8x128xf32>
    %c32_i32_107 = arith.constant 32 : i32
    %264 = vector.broadcast %c32_i32_107 : i32 to vector<8x128xi32>
    %265 = arith.cmpi sge, %0, %264 : vector<8x128xi32>
    %cst_108 = arith.constant 0.000000e+00 : f32
    %266 = vector.broadcast %cst_108 : f32 to vector<8x128xf32>
    %267 = arith.select %265, %263, %266 : vector<8x128xi1>, vector<8x128xf32>
    %c20 = arith.constant 20 : index
    %c0_109 = arith.constant 0 : index
    %268 = vector.load %arg2[%c20, %c0_109] : memref<36x128xf32, #tpu.memory_space<vmem>>, vector<1x128xf32>
    %269 = vector.broadcast %268 : vector<1x128xf32> to vector<8x128xf32>
    %270 = arith.mulf %267, %269 : vector<8x128xf32>
    %271 = arith.addf %262, %270 : vector<8x128xf32>
    %c16_i32_110 = arith.constant 16 : i32
    %272 = tpu.dynamic_rotate %163 by %c16_i32_110 dim 1 : vector<8x128xf32>, i32 -> vector<8x128xf32>
    %c16_i32_111 = arith.constant 16 : i32
    %273 = vector.broadcast %c16_i32_111 : i32 to vector<8x128xi32>
    %274 = arith.cmpi sge, %0, %273 : vector<8x128xi32>
    %cst_112 = arith.constant 0.000000e+00 : f32
    %275 = vector.broadcast %cst_112 : f32 to vector<8x128xf32>
    %276 = arith.select %274, %272, %275 : vector<8x128xi1>, vector<8x128xf32>
    %c21 = arith.constant 21 : index
    %c0_113 = arith.constant 0 : index
    %277 = vector.load %arg2[%c21, %c0_113] : memref<36x128xf32, #tpu.memory_space<vmem>>, vector<1x128xf32>
    %278 = vector.broadcast %277 : vector<1x128xf32> to vector<8x128xf32>
    %279 = arith.mulf %276, %278 : vector<8x128xf32>
    %280 = arith.addf %271, %279 : vector<8x128xf32>
    %c22 = arith.constant 22 : index
    %c0_114 = arith.constant 0 : index
    %281 = vector.load %arg2[%c22, %c0_114] : memref<36x128xf32, #tpu.memory_space<vmem>>, vector<1x128xf32>
    %282 = vector.broadcast %281 : vector<1x128xf32> to vector<8x128xf32>
    %283 = arith.mulf %163, %282 : vector<8x128xf32>
    %284 = arith.addf %280, %283 : vector<8x128xf32>
    %c112_i32_115 = arith.constant 112 : i32
    %285 = tpu.dynamic_rotate %163 by %c112_i32_115 dim 1 : vector<8x128xf32>, i32 -> vector<8x128xf32>
    %c112_i32_116 = arith.constant 112 : i32
    %286 = vector.broadcast %c112_i32_116 : i32 to vector<8x128xi32>
    %287 = arith.cmpi slt, %0, %286 : vector<8x128xi32>
    %cst_117 = arith.constant 0.000000e+00 : f32
    %288 = vector.broadcast %cst_117 : f32 to vector<8x128xf32>
    %289 = arith.select %287, %285, %288 : vector<8x128xi1>, vector<8x128xf32>
    %c23 = arith.constant 23 : index
    %c0_118 = arith.constant 0 : index
    %290 = vector.load %arg2[%c23, %c0_118] : memref<36x128xf32, #tpu.memory_space<vmem>>, vector<1x128xf32>
    %291 = vector.broadcast %290 : vector<1x128xf32> to vector<8x128xf32>
    %292 = arith.mulf %289, %291 : vector<8x128xf32>
    %293 = arith.addf %284, %292 : vector<8x128xf32>
    %c96_i32_119 = arith.constant 96 : i32
    %294 = tpu.dynamic_rotate %163 by %c96_i32_119 dim 1 : vector<8x128xf32>, i32 -> vector<8x128xf32>
    %c96_i32_120 = arith.constant 96 : i32
    %295 = vector.broadcast %c96_i32_120 : i32 to vector<8x128xi32>
    %296 = arith.cmpi slt, %0, %295 : vector<8x128xi32>
    %cst_121 = arith.constant 0.000000e+00 : f32
    %297 = vector.broadcast %cst_121 : f32 to vector<8x128xf32>
    %298 = arith.select %296, %294, %297 : vector<8x128xi1>, vector<8x128xf32>
    %c24 = arith.constant 24 : index
    %c0_122 = arith.constant 0 : index
    %299 = vector.load %arg2[%c24, %c0_122] : memref<36x128xf32, #tpu.memory_space<vmem>>, vector<1x128xf32>
    %300 = vector.broadcast %299 : vector<1x128xf32> to vector<8x128xf32>
    %301 = arith.mulf %298, %300 : vector<8x128xf32>
    %302 = arith.addf %293, %301 : vector<8x128xf32>
    %c32_i32_123 = arith.constant 32 : i32
    %303 = tpu.dynamic_rotate %178 by %c32_i32_123 dim 1 : vector<8x128xf32>, i32 -> vector<8x128xf32>
    %c32_i32_124 = arith.constant 32 : i32
    %304 = vector.broadcast %c32_i32_124 : i32 to vector<8x128xi32>
    %305 = arith.cmpi sge, %0, %304 : vector<8x128xi32>
    %cst_125 = arith.constant 0.000000e+00 : f32
    %306 = vector.broadcast %cst_125 : f32 to vector<8x128xf32>
    %307 = arith.select %305, %303, %306 : vector<8x128xi1>, vector<8x128xf32>
    %c25 = arith.constant 25 : index
    %c0_126 = arith.constant 0 : index
    %308 = vector.load %arg2[%c25, %c0_126] : memref<36x128xf32, #tpu.memory_space<vmem>>, vector<1x128xf32>
    %309 = vector.broadcast %308 : vector<1x128xf32> to vector<8x128xf32>
    %310 = arith.mulf %307, %309 : vector<8x128xf32>
    %311 = arith.addf %302, %310 : vector<8x128xf32>
    %c16_i32_127 = arith.constant 16 : i32
    %312 = tpu.dynamic_rotate %178 by %c16_i32_127 dim 1 : vector<8x128xf32>, i32 -> vector<8x128xf32>
    %c16_i32_128 = arith.constant 16 : i32
    %313 = vector.broadcast %c16_i32_128 : i32 to vector<8x128xi32>
    %314 = arith.cmpi sge, %0, %313 : vector<8x128xi32>
    %cst_129 = arith.constant 0.000000e+00 : f32
    %315 = vector.broadcast %cst_129 : f32 to vector<8x128xf32>
    %316 = arith.select %314, %312, %315 : vector<8x128xi1>, vector<8x128xf32>
    %c26 = arith.constant 26 : index
    %c0_130 = arith.constant 0 : index
    %317 = vector.load %arg2[%c26, %c0_130] : memref<36x128xf32, #tpu.memory_space<vmem>>, vector<1x128xf32>
    %318 = vector.broadcast %317 : vector<1x128xf32> to vector<8x128xf32>
    %319 = arith.mulf %316, %318 : vector<8x128xf32>
    %320 = arith.addf %311, %319 : vector<8x128xf32>
    %c27 = arith.constant 27 : index
    %c0_131 = arith.constant 0 : index
    %321 = vector.load %arg2[%c27, %c0_131] : memref<36x128xf32, #tpu.memory_space<vmem>>, vector<1x128xf32>
    %322 = vector.broadcast %321 : vector<1x128xf32> to vector<8x128xf32>
    %323 = arith.mulf %178, %322 : vector<8x128xf32>
    %324 = arith.addf %320, %323 : vector<8x128xf32>
    %c112_i32_132 = arith.constant 112 : i32
    %325 = tpu.dynamic_rotate %178 by %c112_i32_132 dim 1 : vector<8x128xf32>, i32 -> vector<8x128xf32>
    %c112_i32_133 = arith.constant 112 : i32
    %326 = vector.broadcast %c112_i32_133 : i32 to vector<8x128xi32>
    %327 = arith.cmpi slt, %0, %326 : vector<8x128xi32>
    %cst_134 = arith.constant 0.000000e+00 : f32
    %328 = vector.broadcast %cst_134 : f32 to vector<8x128xf32>
    %329 = arith.select %327, %325, %328 : vector<8x128xi1>, vector<8x128xf32>
    %c28 = arith.constant 28 : index
    %c0_135 = arith.constant 0 : index
    %330 = vector.load %arg2[%c28, %c0_135] : memref<36x128xf32, #tpu.memory_space<vmem>>, vector<1x128xf32>
    %331 = vector.broadcast %330 : vector<1x128xf32> to vector<8x128xf32>
    %332 = arith.mulf %329, %331 : vector<8x128xf32>
    %333 = arith.addf %324, %332 : vector<8x128xf32>
    %c96_i32_136 = arith.constant 96 : i32
    %334 = tpu.dynamic_rotate %178 by %c96_i32_136 dim 1 : vector<8x128xf32>, i32 -> vector<8x128xf32>
    %c96_i32_137 = arith.constant 96 : i32
    %335 = vector.broadcast %c96_i32_137 : i32 to vector<8x128xi32>
    %336 = arith.cmpi slt, %0, %335 : vector<8x128xi32>
    %cst_138 = arith.constant 0.000000e+00 : f32
    %337 = vector.broadcast %cst_138 : f32 to vector<8x128xf32>
    %338 = arith.select %336, %334, %337 : vector<8x128xi1>, vector<8x128xf32>
    %c29 = arith.constant 29 : index
    %c0_139 = arith.constant 0 : index
    %339 = vector.load %arg2[%c29, %c0_139] : memref<36x128xf32, #tpu.memory_space<vmem>>, vector<1x128xf32>
    %340 = vector.broadcast %339 : vector<1x128xf32> to vector<8x128xf32>
    %341 = arith.mulf %338, %340 : vector<8x128xf32>
    %342 = arith.addf %333, %341 : vector<8x128xf32>
    %c32_i32_140 = arith.constant 32 : i32
    %343 = tpu.dynamic_rotate %183 by %c32_i32_140 dim 1 : vector<8x128xf32>, i32 -> vector<8x128xf32>
    %c32_i32_141 = arith.constant 32 : i32
    %344 = vector.broadcast %c32_i32_141 : i32 to vector<8x128xi32>
    %345 = arith.cmpi sge, %0, %344 : vector<8x128xi32>
    %cst_142 = arith.constant 0.000000e+00 : f32
    %346 = vector.broadcast %cst_142 : f32 to vector<8x128xf32>
    %347 = arith.select %345, %343, %346 : vector<8x128xi1>, vector<8x128xf32>
    %c30 = arith.constant 30 : index
    %c0_143 = arith.constant 0 : index
    %348 = vector.load %arg2[%c30, %c0_143] : memref<36x128xf32, #tpu.memory_space<vmem>>, vector<1x128xf32>
    %349 = vector.broadcast %348 : vector<1x128xf32> to vector<8x128xf32>
    %350 = arith.mulf %347, %349 : vector<8x128xf32>
    %351 = arith.addf %342, %350 : vector<8x128xf32>
    %c16_i32_144 = arith.constant 16 : i32
    %352 = tpu.dynamic_rotate %183 by %c16_i32_144 dim 1 : vector<8x128xf32>, i32 -> vector<8x128xf32>
    %c16_i32_145 = arith.constant 16 : i32
    %353 = vector.broadcast %c16_i32_145 : i32 to vector<8x128xi32>
    %354 = arith.cmpi sge, %0, %353 : vector<8x128xi32>
    %cst_146 = arith.constant 0.000000e+00 : f32
    %355 = vector.broadcast %cst_146 : f32 to vector<8x128xf32>
    %356 = arith.select %354, %352, %355 : vector<8x128xi1>, vector<8x128xf32>
    %c31 = arith.constant 31 : index
    %c0_147 = arith.constant 0 : index
    %357 = vector.load %arg2[%c31, %c0_147] : memref<36x128xf32, #tpu.memory_space<vmem>>, vector<1x128xf32>
    %358 = vector.broadcast %357 : vector<1x128xf32> to vector<8x128xf32>
    %359 = arith.mulf %356, %358 : vector<8x128xf32>
    %360 = arith.addf %351, %359 : vector<8x128xf32>
    %c32 = arith.constant 32 : index
    %c0_148 = arith.constant 0 : index
    %361 = vector.load %arg2[%c32, %c0_148] : memref<36x128xf32, #tpu.memory_space<vmem>>, vector<1x128xf32>
    %362 = vector.broadcast %361 : vector<1x128xf32> to vector<8x128xf32>
    %363 = arith.mulf %183, %362 : vector<8x128xf32>
    %364 = arith.addf %360, %363 : vector<8x128xf32>
    %c112_i32_149 = arith.constant 112 : i32
    %365 = tpu.dynamic_rotate %183 by %c112_i32_149 dim 1 : vector<8x128xf32>, i32 -> vector<8x128xf32>
    %c112_i32_150 = arith.constant 112 : i32
    %366 = vector.broadcast %c112_i32_150 : i32 to vector<8x128xi32>
    %367 = arith.cmpi slt, %0, %366 : vector<8x128xi32>
    %cst_151 = arith.constant 0.000000e+00 : f32
    %368 = vector.broadcast %cst_151 : f32 to vector<8x128xf32>
    %369 = arith.select %367, %365, %368 : vector<8x128xi1>, vector<8x128xf32>
    %c33 = arith.constant 33 : index
    %c0_152 = arith.constant 0 : index
    %370 = vector.load %arg2[%c33, %c0_152] : memref<36x128xf32, #tpu.memory_space<vmem>>, vector<1x128xf32>
    %371 = vector.broadcast %370 : vector<1x128xf32> to vector<8x128xf32>
    %372 = arith.mulf %369, %371 : vector<8x128xf32>
    %373 = arith.addf %364, %372 : vector<8x128xf32>
    %c96_i32_153 = arith.constant 96 : i32
    %374 = tpu.dynamic_rotate %183 by %c96_i32_153 dim 1 : vector<8x128xf32>, i32 -> vector<8x128xf32>
    %c96_i32_154 = arith.constant 96 : i32
    %375 = vector.broadcast %c96_i32_154 : i32 to vector<8x128xi32>
    %376 = arith.cmpi slt, %0, %375 : vector<8x128xi32>
    %cst_155 = arith.constant 0.000000e+00 : f32
    %377 = vector.broadcast %cst_155 : f32 to vector<8x128xf32>
    %378 = arith.select %376, %374, %377 : vector<8x128xi1>, vector<8x128xf32>
    %c34 = arith.constant 34 : index
    %c0_156 = arith.constant 0 : index
    %379 = vector.load %arg2[%c34, %c0_156] : memref<36x128xf32, #tpu.memory_space<vmem>>, vector<1x128xf32>
    %380 = vector.broadcast %379 : vector<1x128xf32> to vector<8x128xf32>
    %381 = arith.mulf %378, %380 : vector<8x128xf32>
    %382 = arith.addf %373, %381 : vector<8x128xf32>
    %c35 = arith.constant 35 : index
    %c0_157 = arith.constant 0 : index
    %383 = vector.load %arg2[%c35, %c0_157] : memref<36x128xf32, #tpu.memory_space<vmem>>, vector<1x128xf32>
    %384 = vector.broadcast %383 : vector<1x128xf32> to vector<8x128xf32>
    %385 = arith.addf %382, %384 : vector<8x128xf32>
    %c0_158 = arith.constant 0 : index
    %c128_159 = arith.constant 128 : index
    %386 = vector.load %arg3[%c0_158, %c128_159] : memref<129x768xf32, #tpu.memory_space<vmem>>, vector<128x128xf32>
    %cst_160 = arith.constant dense<0.000000e+00> : vector<8x128xf32>
    %387 = tpu.matmul %385, %386, %cst_160 {dimension_numbers = #tpu.dot_dimension_numbers<[1], [0], [0], [1], [0, 0, 1, 1], [], []>} : vector<8x128xf32>, vector<128x128xf32>, vector<8x128xf32> -> vector<8x128xf32>
    %c128_161 = arith.constant 128 : index
    %c128_162 = arith.constant 128 : index
    %388 = vector.load %arg3[%c128_161, %c128_162] : memref<129x768xf32, #tpu.memory_space<vmem>>, vector<1x128xf32>
    %389 = vector.broadcast %388 : vector<1x128xf32> to vector<8x128xf32>
    %390 = arith.addf %387, %389 : vector<8x128xf32>
    %391 = arith.addf %84, %390 : vector<8x128xf32>
    %c120_i32_163 = arith.constant 120 : i32
    %392 = tpu.dynamic_rotate %391 by %c120_i32_163 dim 1 : vector<8x128xf32>, i32 -> vector<8x128xf32>
    %c8_i32_164 = arith.constant 8 : i32
    %393 = tpu.dynamic_rotate %391 by %c8_i32_164 dim 1 : vector<8x128xf32>, i32 -> vector<8x128xf32>
    %c8_i32_165 = arith.constant 8 : i32
    %394 = vector.broadcast %c8_i32_165 : i32 to vector<8x128xi32>
    %395 = arith.andi %3, %394 : vector<8x128xi32>
    %c0_i32_166 = arith.constant 0 : i32
    %396 = vector.broadcast %c0_i32_166 : i32 to vector<8x128xi32>
    %397 = arith.cmpi eq, %395, %396 : vector<8x128xi32>
    %398 = arith.select %397, %392, %393 : vector<8x128xi1>, vector<8x128xf32>
    %399 = arith.addf %391, %398 : vector<8x128xf32>
    %c124_i32_167 = arith.constant 124 : i32
    %400 = tpu.dynamic_rotate %399 by %c124_i32_167 dim 1 : vector<8x128xf32>, i32 -> vector<8x128xf32>
    %c4_i32_168 = arith.constant 4 : i32
    %401 = tpu.dynamic_rotate %399 by %c4_i32_168 dim 1 : vector<8x128xf32>, i32 -> vector<8x128xf32>
    %c4_i32_169 = arith.constant 4 : i32
    %402 = vector.broadcast %c4_i32_169 : i32 to vector<8x128xi32>
    %403 = arith.andi %3, %402 : vector<8x128xi32>
    %c0_i32_170 = arith.constant 0 : i32
    %404 = vector.broadcast %c0_i32_170 : i32 to vector<8x128xi32>
    %405 = arith.cmpi eq, %403, %404 : vector<8x128xi32>
    %406 = arith.select %405, %400, %401 : vector<8x128xi1>, vector<8x128xf32>
    %407 = arith.addf %399, %406 : vector<8x128xf32>
    %c126_i32_171 = arith.constant 126 : i32
    %408 = tpu.dynamic_rotate %407 by %c126_i32_171 dim 1 : vector<8x128xf32>, i32 -> vector<8x128xf32>
    %c2_i32_172 = arith.constant 2 : i32
    %409 = tpu.dynamic_rotate %407 by %c2_i32_172 dim 1 : vector<8x128xf32>, i32 -> vector<8x128xf32>
    %c2_i32_173 = arith.constant 2 : i32
    %410 = vector.broadcast %c2_i32_173 : i32 to vector<8x128xi32>
    %411 = arith.andi %3, %410 : vector<8x128xi32>
    %c0_i32_174 = arith.constant 0 : i32
    %412 = vector.broadcast %c0_i32_174 : i32 to vector<8x128xi32>
    %413 = arith.cmpi eq, %411, %412 : vector<8x128xi32>
    %414 = arith.select %413, %408, %409 : vector<8x128xi1>, vector<8x128xf32>
    %415 = arith.addf %407, %414 : vector<8x128xf32>
    %c127_i32_175 = arith.constant 127 : i32
    %416 = tpu.dynamic_rotate %415 by %c127_i32_175 dim 1 : vector<8x128xf32>, i32 -> vector<8x128xf32>
    %c1_i32_176 = arith.constant 1 : i32
    %417 = tpu.dynamic_rotate %415 by %c1_i32_176 dim 1 : vector<8x128xf32>, i32 -> vector<8x128xf32>
    %c1_i32_177 = arith.constant 1 : i32
    %418 = vector.broadcast %c1_i32_177 : i32 to vector<8x128xi32>
    %419 = arith.andi %3, %418 : vector<8x128xi32>
    %c0_i32_178 = arith.constant 0 : i32
    %420 = vector.broadcast %c0_i32_178 : i32 to vector<8x128xi32>
    %421 = arith.cmpi eq, %419, %420 : vector<8x128xi32>
    %422 = arith.select %421, %416, %417 : vector<8x128xi1>, vector<8x128xf32>
    %423 = arith.addf %415, %422 : vector<8x128xf32>
    %cst_179 = arith.constant 6.250000e-02 : f32
    %424 = vector.broadcast %cst_179 : f32 to vector<8x128xf32>
    %425 = arith.mulf %423, %424 : vector<8x128xf32>
    %426 = arith.subf %391, %425 : vector<8x128xf32>
    %427 = arith.mulf %426, %426 : vector<8x128xf32>
    %c120_i32_180 = arith.constant 120 : i32
    %428 = tpu.dynamic_rotate %427 by %c120_i32_180 dim 1 : vector<8x128xf32>, i32 -> vector<8x128xf32>
    %c8_i32_181 = arith.constant 8 : i32
    %429 = tpu.dynamic_rotate %427 by %c8_i32_181 dim 1 : vector<8x128xf32>, i32 -> vector<8x128xf32>
    %c8_i32_182 = arith.constant 8 : i32
    %430 = vector.broadcast %c8_i32_182 : i32 to vector<8x128xi32>
    %431 = arith.andi %3, %430 : vector<8x128xi32>
    %c0_i32_183 = arith.constant 0 : i32
    %432 = vector.broadcast %c0_i32_183 : i32 to vector<8x128xi32>
    %433 = arith.cmpi eq, %431, %432 : vector<8x128xi32>
    %434 = arith.select %433, %428, %429 : vector<8x128xi1>, vector<8x128xf32>
    %435 = arith.addf %427, %434 : vector<8x128xf32>
    %c124_i32_184 = arith.constant 124 : i32
    %436 = tpu.dynamic_rotate %435 by %c124_i32_184 dim 1 : vector<8x128xf32>, i32 -> vector<8x128xf32>
    %c4_i32_185 = arith.constant 4 : i32
    %437 = tpu.dynamic_rotate %435 by %c4_i32_185 dim 1 : vector<8x128xf32>, i32 -> vector<8x128xf32>
    %c4_i32_186 = arith.constant 4 : i32
    %438 = vector.broadcast %c4_i32_186 : i32 to vector<8x128xi32>
    %439 = arith.andi %3, %438 : vector<8x128xi32>
    %c0_i32_187 = arith.constant 0 : i32
    %440 = vector.broadcast %c0_i32_187 : i32 to vector<8x128xi32>
    %441 = arith.cmpi eq, %439, %440 : vector<8x128xi32>
    %442 = arith.select %441, %436, %437 : vector<8x128xi1>, vector<8x128xf32>
    %443 = arith.addf %435, %442 : vector<8x128xf32>
    %c126_i32_188 = arith.constant 126 : i32
    %444 = tpu.dynamic_rotate %443 by %c126_i32_188 dim 1 : vector<8x128xf32>, i32 -> vector<8x128xf32>
    %c2_i32_189 = arith.constant 2 : i32
    %445 = tpu.dynamic_rotate %443 by %c2_i32_189 dim 1 : vector<8x128xf32>, i32 -> vector<8x128xf32>
    %c2_i32_190 = arith.constant 2 : i32
    %446 = vector.broadcast %c2_i32_190 : i32 to vector<8x128xi32>
    %447 = arith.andi %3, %446 : vector<8x128xi32>
    %c0_i32_191 = arith.constant 0 : i32
    %448 = vector.broadcast %c0_i32_191 : i32 to vector<8x128xi32>
    %449 = arith.cmpi eq, %447, %448 : vector<8x128xi32>
    %450 = arith.select %449, %444, %445 : vector<8x128xi1>, vector<8x128xf32>
    %451 = arith.addf %443, %450 : vector<8x128xf32>
    %c127_i32_192 = arith.constant 127 : i32
    %452 = tpu.dynamic_rotate %451 by %c127_i32_192 dim 1 : vector<8x128xf32>, i32 -> vector<8x128xf32>
    %c1_i32_193 = arith.constant 1 : i32
    %453 = tpu.dynamic_rotate %451 by %c1_i32_193 dim 1 : vector<8x128xf32>, i32 -> vector<8x128xf32>
    %c1_i32_194 = arith.constant 1 : i32
    %454 = vector.broadcast %c1_i32_194 : i32 to vector<8x128xi32>
    %455 = arith.andi %3, %454 : vector<8x128xi32>
    %c0_i32_195 = arith.constant 0 : i32
    %456 = vector.broadcast %c0_i32_195 : i32 to vector<8x128xi32>
    %457 = arith.cmpi eq, %455, %456 : vector<8x128xi32>
    %458 = arith.select %457, %452, %453 : vector<8x128xi1>, vector<8x128xf32>
    %459 = arith.addf %451, %458 : vector<8x128xf32>
    %cst_196 = arith.constant 6.250000e-02 : f32
    %460 = vector.broadcast %cst_196 : f32 to vector<8x128xf32>
    %461 = arith.mulf %459, %460 : vector<8x128xf32>
    %cst_197 = arith.constant 9.99999997E-7 : f32
    %462 = vector.broadcast %cst_197 : f32 to vector<8x128xf32>
    %463 = arith.addf %461, %462 : vector<8x128xf32>
    %464 = math.rsqrt %463 : vector<8x128xf32>
    %465 = arith.mulf %426, %464 : vector<8x128xf32>
    %c0_198 = arith.constant 0 : index
    %c256 = arith.constant 256 : index
    %466 = vector.load %arg3[%c0_198, %c256] : memref<129x768xf32, #tpu.memory_space<vmem>>, vector<128x512xf32>
    %cst_199 = arith.constant dense<0.000000e+00> : vector<8x512xf32>
    %467 = tpu.matmul %465, %466, %cst_199 {dimension_numbers = #tpu.dot_dimension_numbers<[1], [0], [0], [1], [0, 0, 1, 1], [], []>} : vector<8x128xf32>, vector<128x512xf32>, vector<8x512xf32> -> vector<8x512xf32>
    %c128_200 = arith.constant 128 : index
    %c256_201 = arith.constant 256 : index
    %468 = vector.load %arg3[%c128_200, %c256_201] : memref<129x768xf32, #tpu.memory_space<vmem>>, vector<1x512xf32>
    %469 = vector.broadcast %468 : vector<1x512xf32> to vector<8x512xf32>
    %470 = arith.addf %467, %469 : vector<8x512xf32>
    %cst_202 = arith.constant 5.000000e-01 : f32
    %471 = vector.broadcast %cst_202 : f32 to vector<8x512xf32>
    %472 = arith.mulf %471, %470 : vector<8x512xf32>
    %cst_203 = arith.constant 0.707106769 : f32
    %473 = vector.broadcast %cst_203 : f32 to vector<8x512xf32>
    %474 = arith.mulf %470, %473 : vector<8x512xf32>
    %475 = math.erf %474 : vector<8x512xf32>
    %cst_204 = arith.constant 1.000000e+00 : f32
    %476 = vector.broadcast %cst_204 : f32 to vector<8x512xf32>
    %477 = arith.addf %476, %475 : vector<8x512xf32>
    %478 = arith.mulf %472, %477 : vector<8x512xf32>
    %c0_205 = arith.constant 0 : index
    %c0_206 = arith.constant 0 : index
    %479 = vector.load %arg4[%c0_205, %c0_206] : memref<513x128xf32, #tpu.memory_space<vmem>>, vector<512x128xf32>
    %cst_207 = arith.constant dense<0.000000e+00> : vector<8x128xf32>
    %480 = tpu.matmul %478, %479, %cst_207 {dimension_numbers = #tpu.dot_dimension_numbers<[1], [0], [0], [1], [0, 0, 1, 1], [], []>} : vector<8x512xf32>, vector<512x128xf32>, vector<8x128xf32> -> vector<8x128xf32>
    %c512 = arith.constant 512 : index
    %c0_208 = arith.constant 0 : index
    %481 = vector.load %arg4[%c512, %c0_208] : memref<513x128xf32, #tpu.memory_space<vmem>>, vector<1x128xf32>
    %482 = vector.broadcast %481 : vector<1x128xf32> to vector<8x128xf32>
    %483 = arith.addf %480, %482 : vector<8x128xf32>
    %484 = arith.addf %391, %483 : vector<8x128xf32>
    %c0_209 = arith.constant 0 : index
    %c0_210 = arith.constant 0 : index
    %c0_211 = arith.constant 0 : index
    %485 = vector.load %arg5[%c0_209, %c0_210, %c0_211] : memref<1x8x128xf32, #tpu.memory_space<vmem>>, vector<1x8x128xf32>
    %486 = vector.shape_cast %485 : vector<1x8x128xf32> to vector<8x128xf32>
    %487 = vector.shape_cast %484 : vector<8x128xf32> to vector<1x8x128xf32>
    tpu.vector_store %arg5[%c0_209, %c0_210, %c0_211], %487 {strides = array<i32>} : memref<1x8x128xf32, #tpu.memory_space<vmem>>, vector<1x8x128xf32>,
    return
  }
  func.func @transform_0(%arg0: i32) -> (i32, i32, i32) {
    %c0_i32 = arith.constant 0 : i32
    %c0_i32_0 = arith.constant 0 : i32
    %c0_i32_1 = arith.constant 0 : i32
    return %arg0, %c0_i32, %c0_i32_0 : i32, i32, i32
  }
  func.func @transform_1(%arg0: i32) -> (i32, i32) {
    %c0_i32 = arith.constant 0 : i32
    %c0_i32_0 = arith.constant 0 : i32
    %c0_i32_1 = arith.constant 0 : i32
    return %c0_i32, %c0_i32_0 : i32, i32
  }
  func.func @transform_2(%arg0: i32) -> (i32, i32) {
    %c0_i32 = arith.constant 0 : i32
    %c0_i32_0 = arith.constant 0 : i32
    %c0_i32_1 = arith.constant 0 : i32
    return %c0_i32, %c0_i32_0 : i32, i32
  }
  func.func @transform_3(%arg0: i32) -> (i32, i32) {
    %c0_i32 = arith.constant 0 : i32
    %c0_i32_0 = arith.constant 0 : i32
    %c0_i32_1 = arith.constant 0 : i32
    return %c0_i32, %c0_i32_0 : i32, i32
  }
  func.func @transform_4(%arg0: i32) -> (i32, i32, i32) {
    %c0_i32 = arith.constant 0 : i32
    %c0_i32_0 = arith.constant 0 : i32
    %c0_i32_1 = arith.constant 0 : i32
    return %arg0, %c0_i32, %c0_i32_0 : i32, i32, i32
  }
}

</mosaic_0001>

<llo_original>
// kernel: block_up_forward.1
$region0: #{block_up_forward.1}
  #allocation0 [shape = 'u32[]', space=smem, size = 0x4, offset = 0x4, fixed_abs, tag = 'smem constant byte address 0x4 - core index']
  #allocation1 [shape = 'u32[72,128]{1,0:T(1,128)}', space=vmem, size = 0x9000, scoped, tag = 'internal scratch']
  %s0 = inlined_call_operand.vmem [shape: f32[2,8,128], index: 0, kind: input, shape index: {}]
  %s1 = inlined_call_operand.vmem [shape: f32[36,128], index: 1, kind: input, shape index: {}]
  %s2 = inlined_call_operand.hbm [shape: f32[129,768], index: 2, kind: input, shape index: {}]
  %s3 = inlined_call_operand.hbm [shape: f32[513,128], index: 3, kind: input, shape index: {}]
  %s4 = inlined_call_operand.vmem [shape: f32[2,8,128], index: 4, kind: output, shape index: {}]
  %s5 = sld [smem:[#allocation0]]
  $region57: #{block_up_forward.1} parent=0
    _
  %s7 = ssub.s32 1, %s5
  %s8 = scalar_select 0, %s7, %s5
  $region1: #{block_up_forward.1} parent=0
    #allocation2 [shape = 'u8[417792]{0}', space=vmem, size = 0x66000, scoped, tag = 'input window, operand 2, single buffered']
    #allocation3 [shape = 's32[2]{0}', space=sflag, size = 0x8, scoped, tag = 'scoped memory for block_up_forward.1']
    #allocation4 [shape = 'u8[266240]{0}', space=vmem, size = 0x41000, scoped, tag = 'input window, operand 3, single buffered']
    #allocation5 [shape = 's32[1]{0}', space=sflag, size = 0x4, scoped, tag = 'scoped memory for block_up_forward.1']
    %9 = vsyncpa [#allocation3], 0
    %10 = vsyncpa [#allocation5], 0
    loop: start=0, step=1, limit=4
    $region2: #{block_up_forward.1} parent=1 // loop_pre_header
      _
    $region3: #{block_up_forward.1} parent=1 // loop_header
      %s12 = sphi 0, %s16
      %p13 = scmp.ge.s32.totalorder %s12, 4
      %s22 = sphi 0, %s24
      %s25 = sphi 0, %s22
      %s26 = sphi 0, %s25
      %s42 = sphi 0, %s26
      %s46 = sphi 0, %s46
      %s48 = sphi 0, %s46
      %s49 = sphi 0, %s48
      %s63 = sphi 0, %s49
      %s67 = sphi 0, %s67
      %s69 = sphi 0, %s67
      %s70 = sphi 0, %s69
      %s84 = sphi 0, %s70
      %s88 = sphi 0, %s88
      %s90 = sphi 0, %s88
      %s91 = sphi 0, %s90
      %s105 = sphi 0, %s91
      %s111 = sphi 0, %s113
      %s114 = sphi 0, %s111
      %s115 = sphi 0, %s114
      %s131 = sphi 0, %s115
    $region4: #{block_up_forward.1} parent=1 // loop_header_branch
      %15 = sbr.rel (%p13) target = $region8
    $region5: #{block_up_forward.1} parent=1 // loop_body
      %s17 = ssub.s32 %s12, 1
      %s18 = ssub.s32 %s12, 2
      %s19 = sadd.s32 %s12, 1
      %s20 = ssub.s32 %s12, %s19
      %p21 = scmp.eq.s32.totalorder %s20, 0
      %s23 = sadd.s32 %s22, 1
      %s24 = scalar_select %p21, %s22, %s23
      %p27 = pneg %p21
      %p28 = scmp.eq.s32.totalorder %s12, 1
      %p29 = por %p27, %p28
      %p30 = scmp.ne.s32.totalorder %s22, %s25
      %p31 = scmp.eq.s32.totalorder %s12, 0
      %p32 = por %p30, %p31
      %p33 = scmp.ne.s32.totalorder %s22, %s25
      %p34 = scmp.eq.s32.totalorder %s17, 1
      %p35 = por %p33, %p34
      %p36 = scmp.ne.s32.totalorder %s25, %s26
      %p37 = scmp.eq.s32.totalorder %s17, 0
      %p38 = por %p36, %p37
      %p39 = scmp.ne.s32.totalorder %s25, %s26
      %p40 = scmp.eq.s32.totalorder %s18, 1
      %p41 = por %p39, %p40
      %p43 = scmp.ne.s32.totalorder %s26, %s42
      %p44 = scmp.eq.s32.totalorder %s18, 0
      %p45 = por %p43, %p44
      %s47 = sadd.s32 %s46, 1
      %p50 = scmp.eq.s32.totalorder %s12, 1
      %p51 = scmp.ne.s32.totalorder %s46, %s48
      %p52 = scmp.eq.s32.totalorder %s12, 0
      %p53 = por %p51, %p52
      %p54 = scmp.ne.s32.totalorder %s46, %s48
      %p55 = scmp.eq.s32.totalorder %s17, 1
      %p56 = por %p54, %p55
      %p57 = scmp.ne.s32.totalorder %s48, %s49
      %p58 = scmp.eq.s32.totalorder %s17, 0
      %p59 = por %p57, %p58
      %p60 = scmp.ne.s32.totalorder %s48, %s49
      %p61 = scmp.eq.s32.totalorder %s18, 1
      %p62 = por %p60, %p61
      %p64 = scmp.ne.s32.totalorder %s49, %s63
      %p65 = scmp.eq.s32.totalorder %s18, 0
      %p66 = por %p64, %p65
      %s68 = sadd.s32 %s67, 1
      %p71 = scmp.eq.s32.totalorder %s12, 1
      %p72 = scmp.ne.s32.totalorder %s67, %s69
      %p73 = scmp.eq.s32.totalorder %s12, 0
      %p74 = por %p72, %p73
      %p75 = scmp.ne.s32.totalorder %s67, %s69
      %p76 = scmp.eq.s32.totalorder %s17, 1
      %p77 = por %p75, %p76
      %p78 = scmp.ne.s32.totalorder %s69, %s70
      %p79 = scmp.eq.s32.totalorder %s17, 0
      %p80 = por %p78, %p79
      %p81 = scmp.ne.s32.totalorder %s69, %s70
      %p82 = scmp.eq.s32.totalorder %s18, 1
      %p83 = por %p81, %p82
      %p85 = scmp.ne.s32.totalorder %s70, %s84
      %p86 = scmp.eq.s32.totalorder %s18, 0
      %p87 = por %p85, %p86
      %s89 = sadd.s32 %s88, 1
      %p92 = scmp.eq.s32.totalorder %s12, 1
      %p93 = scmp.ne.s32.totalorder %s88, %s90
      %p94 = scmp.eq.s32.totalorder %s12, 0
      %p95 = por %p93, %p94
      %p96 = scmp.ne.s32.totalorder %s88, %s90
      %p97 = scmp.eq.s32.totalorder %s17, 1
      %p98 = por %p96, %p97
      %p99 = scmp.ne.s32.totalorder %s90, %s91
      %p100 = scmp.eq.s32.totalorder %s17, 0
      %p101 = por %p99, %p100
      %p102 = scmp.ne.s32.totalorder %s90, %s91
      %p103 = scmp.eq.s32.totalorder %s18, 1
      %p104 = por %p102, %p103
      %p106 = scmp.ne.s32.totalorder %s91, %s105
      %p107 = scmp.eq.s32.totalorder %s18, 0
      %p108 = por %p106, %p107
      %s109 = ssub.s32 %s12, %s19
      %p110 = scmp.eq.s32.totalorder %s109, 0
      %s112 = sadd.s32 %s111, 1
      %s113 = scalar_select %p110, %s111, %s112
      %p116 = pneg %p110
      %p117 = scmp.eq.s32.totalorder %s12, 1
      %p118 = por %p116, %p117
      %p119 = scmp.ne.s32.totalorder %s111, %s114
      %p120 = scmp.eq.s32.totalorder %s12, 0
      %p121 = por %p119, %p120
      %p122 = scmp.ne.s32.totalorder %s111, %s114
      %p123 = scmp.eq.s32.totalorder %s17, 1
      %p124 = por %p122, %p123
      %p125 = scmp.ne.s32.totalorder %s114, %s115
      %p126 = scmp.eq.s32.totalorder %s17, 0
      %p127 = por %p125, %p126
      %p128 = scmp.ne.s32.totalorder %s114, %s115
      %p129 = scmp.eq.s32.totalorder %s18, 1
      %p130 = por %p128, %p129
      %p132 = scmp.ne.s32.totalorder %s115, %s131
      %p133 = scmp.eq.s32.totalorder %s18, 0
      %p134 = por %p132, %p133
      %p135 = scmp.le.s32.totalorder 1, %s12
      %p136 = scmp.lt.s32.totalorder %s12, 3
      %p137 = pnand %p135, %p136
      %p138 = pneg %p137
      // Predicated region
      $region9: #{block_up_forward.1} parent=5 // pred_check
        _
      $region10: #{block_up_forward.1} parent=5 // pred_check_branch
        %140 = sbr.rel (%p137) target = $region12
      $region11: #{block_up_forward.1} parent=5 // pred_region
        %s141 = ssub.s32 %s12, 1
        // Predicated region
        $region13: #{block_up_forward.1} parent=11 // pred_check
          %p142 = pneg %p59
        $region14: #{block_up_forward.1} parent=11 // pred_check_branch
          %144 = sbr.rel (%p142) target = $region16
        $region15: #{block_up_forward.1} parent=11 // pred_region
          _
        $region16: #{block_up_forward.1} parent=11 // pred_fallthru
          _
        // Predicated region
        $region17: #{block_up_forward.1} parent=11 // pred_check
          %p145 = pneg %p80
        $region18: #{block_up_forward.1} parent=11 // pred_check_branch
          %147 = sbr.rel (%p145) target = $region20
        $region19: #{block_up_forward.1} parent=11 // pred_region
          %149 = vsyncadd [#allocation3], 0
          %s150 = sshll.u32 %s2, 4
          %s151 = int_to_ptr.hbm [resolvable:$true] %s150
          %s152 = sshll.u32 [#allocation2], 4
          %s153 = int_to_ptr.vmem [resolvable:$true] %s152
          %158 = dma.hbm_to_vmem [thread:$0]  %s151, 13056, %s153, [#allocation3], 768, 768, 48
        $region20: #{block_up_forward.1} parent=11 // pred_fallthru
          _
        // Predicated region
        $region21: #{block_up_forward.1} parent=11 // pred_check
          %p159 = pneg %p101
        $region22: #{block_up_forward.1} parent=11 // pred_check_branch
          %161 = sbr.rel (%p159) target = $region24
        $region23: #{block_up_forward.1} parent=11 // pred_region
          %163 = vsyncadd [#allocation5], 0
          %s164 = sshll.u32 %s3, 4
          %s165 = int_to_ptr.hbm [resolvable:$true] %s164
          %s166 = sshll.u32 [#allocation4], 4
          %s167 = int_to_ptr.vmem [resolvable:$true] %s166
          %172 = dma.hbm_to_vmem [thread:$0]  %s165, 8320, %s167, [#allocation5], 128, 128, 8
        $region24: #{block_up_forward.1} parent=11 // pred_fallthru
          _
      $region12: #{block_up_forward.1} parent=5 // pred_fallthru
        _
      %p173 = scmp.lt.s32.totalorder %s12, 2
      // Predicated region
      $region25: #{block_up_forward.1} parent=5 // pred_check
        %p174 = pneg %p173
      $region26: #{block_up_forward.1} parent=5 // pred_check_branch
        %176 = sbr.rel (%p174) target = $region28
      $region27: #{block_up_forward.1} parent=5 // pred_region
        // Predicated region
        $region29: #{block_up_forward.1} parent=27 // pred_check
          %p177 = pneg %p32
        $region30: #{block_up_forward.1} parent=27 // pred_check_branch
          %179 = sbr.rel (%p177) target = $region32
        $region31: #{block_up_forward.1} parent=27 // pred_region
          %p180 = scmp.lt.s32.totalorder %s12, 1
          %s181 = scalar_select %p180, %s12, 1
          %s182 = smul.addr %s181, 8
          %s183 = scalar_lea.vmem %s0, %s182
        $region32: #{block_up_forward.1} parent=27 // pred_fallthru
          _
      $region28: #{block_up_forward.1} parent=5 // pred_fallthru
        _
      %p184 = scmp.le.s32.totalorder 1, %s12
      %p185 = scmp.lt.s32.totalorder %s12, 3
      %p186 = pnand %p184, %p185
      %p187 = pneg %p186
      // Predicated region
      $region33: #{block_up_forward.1} parent=5 // pred_check
        _
      $region34: #{block_up_forward.1} parent=5 // pred_check_branch
        %189 = sbr.rel (%p186) target = $region36
      $region35: #{block_up_forward.1} parent=5 // pred_region
        %s190 = ssub.s32 %s12, 1
        // Predicated region
        $region37: #{block_up_forward.1} parent=35 // pred_check
          %p191 = pneg %p80
        $region38: #{block_up_forward.1} parent=35 // pred_check_branch
          %193 = sbr.rel (%p191) target = $region40
        $region39: #{block_up_forward.1} parent=35 // pred_region
          %195 = dma.done [#allocation3], 13056
        $region40: #{block_up_forward.1} parent=35 // pred_fallthru
          _
        // Predicated region
        $region41: #{block_up_forward.1} parent=35 // pred_check
          %p196 = pneg %p101
        $region42: #{block_up_forward.1} parent=35 // pred_check_branch
          %198 = sbr.rel (%p196) target = $region44
        $region43: #{block_up_forward.1} parent=35 // pred_region
          %200 = dma.done [#allocation5], 8320
        $region44: #{block_up_forward.1} parent=35 // pred_fallthru
          _
        %p201 = scmp.lt.s32.totalorder %s17, 1
        %s202 = scalar_select %p201, %s17, 1
        %s203 = smul.addr %s202, 8
        %s204 = scalar_lea.vmem %s0, %s203
        %p205 = pneg %p38
        %p206 = pneg %p35
        %p207 = pneg %p59
        %p208 = pneg %p56
        %p209 = pneg %p80
        %p210 = pneg %p77
        %p211 = pneg %p101
        %p212 = pneg %p98
        %p213 = pneg %p127
        %p214 = pneg %p124
        %p215 = scmp.lt.s32.totalorder %s17, 1
        %s216 = scalar_select %p215, %s17, 1
        %s217 = smul.addr %s216, 8
        %s218 = scalar_lea.vmem %s4, %s217
        %p219 = scmp.lt.s32.totalorder %s17, 1
        %s220 = scalar_select %p219, %s17, 1
        %s221 = smul.addr %s220, 8
        %s222 = scalar_lea.vmem %s0, %s221
        %p223 = scmp.lt.s32.totalorder %s17, 1
        %s224 = scalar_select %p223, %s17, 1
        %s225 = smul.addr %s224, 8
        %s226 = scalar_lea.vmem %s4, %s225
        %v227 = vlaneseq
        %v228 = vand.u32 %v227, 127
        %v229 = vlaneseq
        %v230 = vshrl.u32 %v229, 7
        %v231 = vand.u32 %v228, 15
        %v232 = vld [vmem:[%s222] sm:$0xff]
        %v233 = vrot.slane %v232, 7
        %vm234 = vcmp.ge.s32.totalorder %v230, 1
        %v235 = vsel %vm234, %v233, 0.0
        %v236 = vrot.slane %v232, 1
        %vm237 = vcmp.lt.s32.totalorder %v230, 7
        %v238 = vsel %vm237, %v236, 0.0
        %239 = vrot.lane.b32.xlu0 %v235, 16
        %v240 = vpop.permute.xlu0 %239
        %vm241 = vcmp.ge.s32.totalorder %v228, 16
        %v242 = vsel %vm241, %v240, 0.0
        %v243 = vld [vmem:[%s1] sm:$0x1]
        %v244 = vperm.slane %v243, 0
        %v245 = vmul.f32 %v242, %v244
        %v246 = vld [vmem:[%s1 + $0x1] sm:$0x1]
        %v247 = vperm.slane %v246, 0
        %v248 = vmul.f32 %v235, %v247
        %v249 = vadd.f32 %v245, %v248
        %250 = vrot.lane.b32.xlu0 %v235, 112
        %v251 = vpop.permute.xlu0 %250
        %vm252 = vcmp.lt.s32.totalorder %v228, 112
        %v253 = vsel %vm252, %v251, 0.0
        %v254 = vld [vmem:[%s1 + $0x2] sm:$0x1]
        %v255 = vperm.slane %v254, 0
        %v256 = vmul.f32 %v253, %v255
        %v257 = vadd.f32 %v249, %v256
        %258 = vrot.lane.b32.xlu0 %v232, 16
        %v259 = vpop.permute.xlu0 %258
        %v260 = vsel %vm241, %v259, 0.0
        %v261 = vld [vmem:[%s1 + $0x3] sm:$0x1]
        %v262 = vperm.slane %v261, 0
        %v263 = vmul.f32 %v260, %v262
        %v264 = vadd.f32 %v257, %v263
        %v265 = vld [vmem:[%s1 + $0x4] sm:$0x1]
        %v266 = vperm.slane %v265, 0
        %v267 = vmul.f32 %v232, %v266
        %v268 = vadd.f32 %v264, %v267
        %269 = vrot.lane.b32.xlu0 %v232, 112
        %v270 = vpop.permute.xlu0 %269
        %v271 = vsel %vm252, %v270, 0.0
        %v272 = vld [vmem:[%s1 + $0x5] sm:$0x1]
        %v273 = vperm.slane %v272, 0
        %v274 = vmul.f32 %v271, %v273
        %v275 = vadd.f32 %v268, %v274
        %276 = vrot.lane.b32.xlu0 %v238, 16
        %v277 = vpop.permute.xlu0 %276
        %v278 = vsel %vm241, %v277, 0.0
        %v279 = vld [vmem:[%s1 + $0x6] sm:$0x1]
        %v280 = vperm.slane %v279, 0
        %v281 = vmul.f32 %v278, %v280
        %v282 = vadd.f32 %v275, %v281
        %v283 = vld [vmem:[%s1 + $0x7] sm:$0x1]
        %v284 = vperm.slane %v283, 0
        %v285 = vmul.f32 %v238, %v284
        %v286 = vadd.f32 %v282, %v285
        %287 = vrot.lane.b32.xlu0 %v238, 112
        %v288 = vpop.permute.xlu0 %287
        %v289 = vsel %vm252, %v288, 0.0
        %v290 = vld [vmem:[%s1 + $0x8] sm:$0x1]
        %v291 = vperm.slane %v290, 0
        %v292 = vmul.f32 %v289, %v291
        %v293 = vadd.f32 %v286, %v292
        %v294 = vadd.f32 %v232, %v293
        %v295 = vld [vmem:[%s1 + $0x9] sm:$0x1]
        %v296 = vperm.slane %v295, 0
        %v297 = vadd.f32 %v294, %v296
        %298 = vrot.lane.b32.xlu0 %v297, 120
        %v299 = vpop.permute.xlu0 %298
        %300 = vrot.lane.b32.xlu0 %v297, 8
        %v301 = vpop.permute.xlu0 %300
        %v302 = vand.u32 %v231, 8
        %vm303 = vcmp.eq.s32.totalorder %v302, 0
        %v304 = vsel %vm303, %v299, %v301
        %v305 = vadd.f32 %v297, %v304
        %306 = vrot.lane.b32.xlu0 %v305, 124
        %v307 = vpop.permute.xlu0 %306
        %308 = vrot.lane.b32.xlu0 %v305, 4
        %v309 = vpop.permute.xlu0 %308
        %v310 = vand.u32 %v231, 4
        %vm311 = vcmp.eq.s32.totalorder %v310, 0
        %v312 = vsel %vm311, %v307, %v309
        %v313 = vadd.f32 %v305, %v312
        %314 = vrot.lane.b32.xlu0 %v313, 126
        %v315 = vpop.permute.xlu0 %314
        %316 = vrot.lane.b32.xlu0 %v313, 2
        %v317 = vpop.permute.xlu0 %316
        %v318 = vand.u32 %v231, 2
        %vm319 = vcmp.eq.s32.totalorder %v318, 0
        %v320 = vsel %vm319, %v315, %v317
        %v321 = vadd.f32 %v313, %v320
        %322 = vrot.lane.b32.xlu0 %v321, 127
        %v323 = vpop.permute.xlu0 %322
        %324 = vrot.lane.b32.xlu0 %v321, 1
        %v325 = vpop.permute.xlu0 %324
        %v326 = vand.u32 %v231, 1
        %vm327 = vcmp.eq.s32.totalorder %v326, 0
        %v328 = vsel %vm327, %v323, %v325
        %v329 = vadd.f32 %v321, %v328
        %v330 = vmul.f32 %v329, 0.0625
        %v331 = vsub.f32 %v297, %v330
        %v332 = vmul.f32 %v331, %v331
        %333 = vrot.lane.b32.xlu0 %v332, 120
        %v334 = vpop.permute.xlu0 %333
        %335 = vrot.lane.b32.xlu0 %v332, 8
        %v336 = vpop.permute.xlu0 %335
        %v337 = vsel %vm303, %v334, %v336
        %v338 = vadd.f32 %v332, %v337
        %339 = vrot.lane.b32.xlu0 %v338, 124
        %v340 = vpop.permute.xlu0 %339
        %341 = vrot.lane.b32.xlu0 %v338, 4
        %v342 = vpop.permute.xlu0 %341
        %v343 = vsel %vm311, %v340, %v342
        %v344 = vadd.f32 %v338, %v343
        %345 = vrot.lane.b32.xlu0 %v344, 126
        %v346 = vpop.permute.xlu0 %345
        %347 = vrot.lane.b32.xlu0 %v344, 2
        %v348 = vpop.permute.xlu0 %347
        %v349 = vsel %vm319, %v346, %v348
        %v350 = vadd.f32 %v344, %v349
        %351 = vrot.lane.b32.xlu0 %v350, 127
        %v352 = vpop.permute.xlu0 %351
        %353 = vrot.lane.b32.xlu0 %v350, 1
        %v354 = vpop.permute.xlu0 %353
        %v355 = vsel %vm327, %v352, %v354
        %v356 = vadd.f32 %v350, %v355
        %v357 = vmul.f32 %v356, 0.0625
        %v358 = vadd.f32 %v357, 1e-06
        %v359 = vrsqrt.pop %v358
        %v360 = vmul.f32 %v359, %v358
        %v361 = vmul.f32 %v360, %v359
        %v362 = vmul.f32 0.5, %v361
        %v363 = vsub.f32 1.5, %v362
        %v364 = vmul.f32 %v359, %v363
        %vm365 = vweird.f32 %v358
        %vm366 = vweird.f32 %v359
        %vm367 = vmor %vm365, %vm366
        %v368 = vsel %vm367, %v359, %v364
        %v369 = vmul.f32 %v331, %v368
        %v370 = vld [vmem:[#allocation2] sm:$0xff]
        %v371 = vld [vmem:[#allocation2 + $0x30] sm:$0xff]
        %v372 = vld [vmem:[#allocation2 + $0x60] sm:$0xff]
        %v373 = vld [vmem:[#allocation2 + $0x90] sm:$0xff]
        %v374 = vld [vmem:[#allocation2 + $0xc0] sm:$0xff]
        %v375 = vld [vmem:[#allocation2 + $0xf0] sm:$0xff]
        %v376 = vld [vmem:[#allocation2 + $0x120] sm:$0xff]
        %v377 = vld [vmem:[#allocation2 + $0x150] sm:$0xff]
        %v378 = vld [vmem:[#allocation2 + $0x180] sm:$0xff]
        %v379 = vld [vmem:[#allocation2 + $0x1b0] sm:$0xff]
        %v380 = vld [vmem:[#allocation2 + $0x1e0] sm:$0xff]
        %v381 = vld [vmem:[#allocation2 + $0x210] sm:$0xff]
        %v382 = vld [vmem:[#allocation2 + $0x240] sm:$0xff]
        %v383 = vld [vmem:[#allocation2 + $0x270] sm:$0xff]
        %v384 = vld [vmem:[#allocation2 + $0x2a0] sm:$0xff]
        %v385 = vld [vmem:[#allocation2 + $0x2d0] sm:$0xff]
        %v386 = vld [vmem:[#allocation2 + $0x300] ss:$0 sm:$0xff]
        %387 = vmatpush.msra.mxu0 %v385
        %388 = vmatpush.msra.mxu0 %v384
        %389 = vmatpush.msra.mxu0 %v383
        %390 = vmatpush.msra.mxu0 %v382
        %391 = vmatpush.msra.mxu0 %v381
        %392 = vmatpush.msra.mxu0 %v380
        %393 = vmatpush.msra.mxu0 %v379
        %394 = vmatpush.msra.mxu0 %v378
        %395 = vmatpush.msra.mxu0 %v377
        %396 = vmatpush.msra.mxu0 %v376
        %397 = vmatpush.msra.mxu0 %v375
        %398 = vmatpush.msra.mxu0 %v374
        %399 = vmatpush.msra.mxu0 %v373
        %400 = vmatpush.msra.mxu0 %v372
        %401 = vmatpush.msra.mxu0 %v371
        %402 = vmatpush.msra.mxu0 %v370
        %403 = vmatmul.f32.gmra.mxu0 %v369
        %v404 = vpop.f32.mrf.mxu0
        %v405 = vadd.f32 %v386, %v404
        %406 = vdwg.mxu0
        %v407 = vrot.slane %v405, 6
        %vm408 = vcmp.ge.s32.totalorder %v230, 2
        %v409 = vsel %vm408, %v407, 0.0
        %v410 = vrot.slane %v405, 7
        %v411 = vsel %vm234, %v410, 0.0
        %v412 = vrot.slane %v405, 1
        %v413 = vsel %vm237, %v412, 0.0
        %v414 = vrot.slane %v405, 2
        %vm415 = vcmp.lt.s32.totalorder %v230, 6
        %v416 = vsel %vm415, %v414, 0.0
        %417 = vrot.lane.b32.xlu0 %v409, 32
        %v418 = vpop.permute.xlu0 %417
        %vm419 = vcmp.ge.s32.totalorder %v228, 32
        %v420 = vsel %vm419, %v418, 0.0
        %v421 = vld [vmem:[%s1 + $0xa] sm:$0x1]
        %v422 = vperm.slane %v421, 0
        %v423 = vmul.f32 %v420, %v422
        %424 = vrot.lane.b32.xlu0 %v409, 16
        %v425 = vpop.permute.xlu0 %424
        %v426 = vsel %vm241, %v425, 0.0
        %v427 = vld [vmem:[%s1 + $0xb] sm:$0x1]
        %v428 = vperm.slane %v427, 0
        %v429 = vmul.f32 %v426, %v428
        %v430 = vadd.f32 %v423, %v429
        %v431 = vld [vmem:[%s1 + $0xc] sm:$0x1]
        %v432 = vperm.slane %v431, 0
        %v433 = vmul.f32 %v409, %v432
        %v434 = vadd.f32 %v430, %v433
        %435 = vrot.lane.b32.xlu0 %v409, 112
        %v436 = vpop.permute.xlu0 %435
        %v437 = vsel %vm252, %v436, 0.0
        %v438 = vld [vmem:[%s1 + $0xd] sm:$0x1]
        %v439 = vperm.slane %v438, 0
        %v440 = vmul.f32 %v437, %v439
        %v441 = vadd.f32 %v434, %v440
        %442 = vrot.lane.b32.xlu0 %v409, 96
        %v443 = vpop.permute.xlu0 %442
        %vm444 = vcmp.lt.s32.totalorder %v228, 96
        %v445 = vsel %vm444, %v443, 0.0
        %v446 = vld [vmem:[%s1 + $0xe] sm:$0x1]
        %v447 = vperm.slane %v446, 0
        %v448 = vmul.f32 %v445, %v447
        %v449 = vadd.f32 %v441, %v448
        %450 = vrot.lane.b32.xlu0 %v411, 32
        %v451 = vpop.permute.xlu0 %450
        %v452 = vsel %vm419, %v451, 0.0
        %v453 = vld [vmem:[%s1 + $0xf] sm:$0x1]
        %v454 = vperm.slane %v453, 0
        %v455 = vmul.f32 %v452, %v454
        %v456 = vadd.f32 %v449, %v455
        %457 = vrot.lane.b32.xlu0 %v411, 16
        %v458 = vpop.permute.xlu0 %457
        %v459 = vsel %vm241, %v458, 0.0
        %v460 = vld [vmem:[%s1 + $0x10] sm:$0x1]
        %v461 = vperm.slane %v460, 0
        %v462 = vmul.f32 %v459, %v461
        %v463 = vadd.f32 %v456, %v462
        %v464 = vld [vmem:[%s1 + $0x11] sm:$0x1]
        %v465 = vperm.slane %v464, 0
        %v466 = vmul.f32 %v411, %v465
        %v467 = vadd.f32 %v463, %v466
        %468 = vrot.lane.b32.xlu0 %v411, 112
        %v469 = vpop.permute.xlu0 %468
        %v470 = vsel %vm252, %v469, 0.0
        %v471 = vld [vmem:[%s1 + $0x12] sm:$0x1]
        %v472 = vperm.slane %v471, 0
        %v473 = vmul.f32 %v470, %v472
        %v474 = vadd.f32 %v467, %v473
        %475 = vrot.lane.b32.xlu0 %v411, 96
        %v476 = vpop.permute.xlu0 %475
        %v477 = vsel %vm444, %v476, 0.0
        %v478 = vld [vmem:[%s1 + $0x13] sm:$0x1]
        %v479 = vperm.slane %v478, 0
        %v480 = vmul.f32 %v477, %v479
        %v481 = vadd.f32 %v474, %v480
        %482 = vrot.lane.b32.xlu0 %v405, 32
        %v483 = vpop.permute.xlu0 %482
        %v484 = vsel %vm419, %v483, 0.0
        %v485 = vld [vmem:[%s1 + $0x14] sm:$0x1]
        %v486 = vperm.slane %v485, 0
        %v487 = vmul.f32 %v484, %v486
        %v488 = vadd.f32 %v481, %v487
        %489 = vrot.lane.b32.xlu0 %v405, 16
        %v490 = vpop.permute.xlu0 %489
        %v491 = vsel %vm241, %v490, 0.0
        %v492 = vld [vmem:[%s1 + $0x15] sm:$0x1]
        %v493 = vperm.slane %v492, 0
        %v494 = vmul.f32 %v491, %v493
        %v495 = vadd.f32 %v488, %v494
        %v496 = vld [vmem:[%s1 + $0x16] sm:$0x1]
        %v497 = vperm.slane %v496, 0
        %v498 = vmul.f32 %v405, %v497
        %v499 = vadd.f32 %v495, %v498
        %500 = vrot.lane.b32.xlu0 %v405, 112
        %v501 = vpop.permute.xlu0 %500
        %v502 = vsel %vm252, %v501, 0.0
        %v503 = vld [vmem:[%s1 + $0x17] sm:$0x1]
        %v504 = vperm.slane %v503, 0
        %v505 = vmul.f32 %v502, %v504
        %v506 = vadd.f32 %v499, %v505
        %507 = vrot.lane.b32.xlu0 %v405, 96
        %v508 = vpop.permute.xlu0 %507
        %v509 = vsel %vm444, %v508, 0.0
        %v510 = vld [vmem:[%s1 + $0x18] sm:$0x1]
        %v511 = vperm.slane %v510, 0
        %v512 = vmul.f32 %v509, %v511
        %v513 = vadd.f32 %v506, %v512
        %514 = vrot.lane.b32.xlu0 %v413, 32
        %v515 = vpop.permute.xlu0 %514
        %v516 = vsel %vm419, %v515, 0.0
        %v517 = vld [vmem:[%s1 + $0x19] sm:$0x1]
        %v518 = vperm.slane %v517, 0
        %v519 = vmul.f32 %v516, %v518
        %v520 = vadd.f32 %v513, %v519
        %521 = vrot.lane.b32.xlu0 %v413, 16
        %v522 = vpop.permute.xlu0 %521
        %v523 = vsel %vm241, %v522, 0.0
        %v524 = vld [vmem:[%s1 + $0x1a] sm:$0x1]
        %v525 = vperm.slane %v524, 0
        %v526 = vmul.f32 %v523, %v525
        %v527 = vadd.f32 %v520, %v526
        %v528 = vld [vmem:[%s1 + $0x1b] sm:$0x1]
        %v529 = vperm.slane %v528, 0
        %v530 = vmul.f32 %v413, %v529
        %v531 = vadd.f32 %v527, %v530
        %532 = vrot.lane.b32.xlu0 %v413, 112
        %v533 = vpop.permute.xlu0 %532
        %v534 = vsel %vm252, %v533, 0.0
        %v535 = vld [vmem:[%s1 + $0x1c] sm:$0x1]
        %v536 = vperm.slane %v535, 0
        %v537 = vmul.f32 %v534, %v536
        %v538 = vadd.f32 %v531, %v537
        %539 = vrot.lane.b32.xlu0 %v413, 96
        %v540 = vpop.permute.xlu0 %539
        %v541 = vsel %vm444, %v540, 0.0
        %v542 = vld [vmem:[%s1 + $0x1d] sm:$0x1]
        %v543 = vperm.slane %v542, 0
        %v544 = vmul.f32 %v541, %v543
        %v545 = vadd.f32 %v538, %v544
        %546 = vrot.lane.b32.xlu0 %v416, 32
        %v547 = vpop.permute.xlu0 %546
        %v548 = vsel %vm419, %v547, 0.0
        %v549 = vld [vmem:[%s1 + $0x1e] sm:$0x1]
        %v550 = vperm.slane %v549, 0
        %v551 = vmul.f32 %v548, %v550
        %v552 = vadd.f32 %v545, %v551
        %553 = vrot.lane.b32.xlu0 %v416, 16
        %v554 = vpop.permute.xlu0 %553
        %v555 = vsel %vm241, %v554, 0.0
        %v556 = vld [vmem:[%s1 + $0x1f] sm:$0x1]
        %v557 = vperm.slane %v556, 0
        %v558 = vmul.f32 %v555, %v557
        %v559 = vadd.f32 %v552, %v558
        %v560 = vld [vmem:[%s1 + $0x20] sm:$0x1]
        %v561 = vperm.slane %v560, 0
        %v562 = vmul.f32 %v416, %v561
        %v563 = vadd.f32 %v559, %v562
        %564 = vrot.lane.b32.xlu0 %v416, 112
        %v565 = vpop.permute.xlu0 %564
        %v566 = vsel %vm252, %v565, 0.0
        %v567 = vld [vmem:[%s1 + $0x21] sm:$0x1]
        %v568 = vperm.slane %v567, 0
        %v569 = vmul.f32 %v566, %v568
        %v570 = vadd.f32 %v563, %v569
        %571 = vrot.lane.b32.xlu0 %v416, 96
        %v572 = vpop.permute.xlu0 %571
        %v573 = vsel %vm444, %v572, 0.0
        %v574 = vld [vmem:[%s1 + $0x22] sm:$0x1]
        %v575 = vperm.slane %v574, 0
        %v576 = vmul.f32 %v573, %v575
        %v577 = vadd.f32 %v570, %v576
        %v578 = vld [vmem:[%s1 + $0x23] sm:$0x1]
        %v579 = vperm.slane %v578, 0
        %v580 = vadd.f32 %v577, %v579
        %v581 = vld [vmem:[#allocation2 + $0x8] sm:$0xff]
        %v582 = vld [vmem:[#allocation2 + $0x38] sm:$0xff]
        %v583 = vld [vmem:[#allocation2 + $0x68] sm:$0xff]
        %v584 = vld [vmem:[#allocation2 + $0x98] sm:$0xff]
        %v585 = vld [vmem:[#allocation2 + $0xc8] sm:$0xff]
        %v586 = vld [vmem:[#allocation2 + $0xf8] sm:$0xff]
        %v587 = vld [vmem:[#allocation2 + $0x128] sm:$0xff]
        %v588 = vld [vmem:[#allocation2 + $0x158] sm:$0xff]
        %v589 = vld [vmem:[#allocation2 + $0x188] sm:$0xff]
        %v590 = vld [vmem:[#allocation2 + $0x1b8] sm:$0xff]
        %v591 = vld [vmem:[#allocation2 + $0x1e8] sm:$0xff]
        %v592 = vld [vmem:[#allocation2 + $0x218] sm:$0xff]
        %v593 = vld [vmem:[#allocation2 + $0x248] sm:$0xff]
        %v594 = vld [vmem:[#allocation2 + $0x278] sm:$0xff]
        %v595 = vld [vmem:[#allocation2 + $0x2a8] sm:$0xff]
        %v596 = vld [vmem:[#allocation2 + $0x2d8] sm:$0xff]
        %v597 = vld [vmem:[#allocation2 + $0x308] ss:$0 sm:$0xff]
        %598 = vmatpush.msra.mxu0 %v596
        %599 = vmatpush.msra.mxu0 %v595
        %600 = vmatpush.msra.mxu0 %v594
        %601 = vmatpush.msra.mxu0 %v593
        %602 = vmatpush.msra.mxu0 %v592
        %603 = vmatpush.msra.mxu0 %v591
        %604 = vmatpush.msra.mxu0 %v590
        %605 = vmatpush.msra.mxu0 %v589
        %606 = vmatpush.msra.mxu0 %v588
        %607 = vmatpush.msra.mxu0 %v587
        %608 = vmatpush.msra.mxu0 %v586
        %609 = vmatpush.msra.mxu0 %v585
        %610 = vmatpush.msra.mxu0 %v584
        %611 = vmatpush.msra.mxu0 %v583
        %612 = vmatpush.msra.mxu0 %v582
        %613 = vmatpush.msra.mxu0 %v581
        %614 = vmatmul.f32.gmra.mxu0 %v580
        %v615 = vpop.f32.mrf.mxu0
        %v616 = vadd.f32 %v597, %v615
        %617 = vdwg.mxu0
        %v618 = vadd.f32 %v297, %v616
        %619 = vrot.lane.b32.xlu0 %v618, 120
        %v620 = vpop.permute.xlu0 %619
        %621 = vrot.lane.b32.xlu0 %v618, 8
        %v622 = vpop.permute.xlu0 %621
        %v623 = vsel %vm303, %v620, %v622
        %v624 = vadd.f32 %v618, %v623
        %625 = vrot.lane.b32.xlu0 %v624, 124
        %v626 = vpop.permute.xlu0 %625
        %627 = vrot.lane.b32.xlu0 %v624, 4
        %v628 = vpop.permute.xlu0 %627
        %v629 = vsel %vm311, %v626, %v628
        %v630 = vadd.f32 %v624, %v629
        %631 = vrot.lane.b32.xlu0 %v630, 126
        %v632 = vpop.permute.xlu0 %631
        %633 = vrot.lane.b32.xlu0 %v630, 2
        %v634 = vpop.permute.xlu0 %633
        %v635 = vsel %vm319, %v632, %v634
        %v636 = vadd.f32 %v630, %v635
        %637 = vrot.lane.b32.xlu0 %v636, 127
        %v638 = vpop.permute.xlu0 %637
        %639 = vrot.lane.b32.xlu0 %v636, 1
        %v640 = vpop.permute.xlu0 %639
        %v641 = vsel %vm327, %v638, %v640
        %v642 = vadd.f32 %v636, %v641
        %v643 = vmul.f32 %v642, 0.0625
        %v644 = vsub.f32 %v618, %v643
        %v645 = vmul.f32 %v644, %v644
        %646 = vrot.lane.b32.xlu0 %v645, 120
        %v647 = vpop.permute.xlu0 %646
        %648 = vrot.lane.b32.xlu0 %v645, 8
        %v649 = vpop.permute.xlu0 %648
        %v650 = vsel %vm303, %v647, %v649
        %v651 = vadd.f32 %v645, %v650
        %652 = vrot.lane.b32.xlu0 %v651, 124
        %v653 = vpop.permute.xlu0 %652
        %654 = vrot.lane.b32.xlu0 %v651, 4
        %v655 = vpop.permute.xlu0 %654
        %v656 = vsel %vm311, %v653, %v655
        %v657 = vadd.f32 %v651, %v656
        %658 = vrot.lane.b32.xlu0 %v657, 126
        %v659 = vpop.permute.xlu0 %658
        %660 = vrot.lane.b32.xlu0 %v657, 2
        %v661 = vpop.permute.xlu0 %660
        %v662 = vsel %vm319, %v659, %v661
        %v663 = vadd.f32 %v657, %v662
        %664 = vrot.lane.b32.xlu0 %v663, 127
        %v665 = vpop.permute.xlu0 %664
        %666 = vrot.lane.b32.xlu0 %v663, 1
        %v667 = vpop.permute.xlu0 %666
        %v668 = vsel %vm327, %v665, %v667
        %v669 = vadd.f32 %v663, %v668
        %v670 = vmul.f32 %v669, 0.0625
        %v671 = vadd.f32 %v670, 1e-06
        %v672 = vrsqrt.pop %v671
        %v673 = vmul.f32 %v672, %v671
        %v674 = vmul.f32 %v673, %v672
        %v675 = vmul.f32 0.5, %v674
        %v676 = vsub.f32 1.5, %v675
        %v677 = vmul.f32 %v672, %v676
        %vm678 = vweird.f32 %v671
        %vm679 = vweird.f32 %v672
        %vm680 = vmor %vm678, %vm679
        %v681 = vsel %vm680, %v672, %v677
        %v682 = vmul.f32 %v644, %v681
        %v683 = vld [vmem:[#allocation2 + $0x10] sm:$0xff]
        %v684 = vld [vmem:[#allocation2 + $0x18] sm:$0xff]
        %v685 = vld [vmem:[#allocation2 + $0x20] sm:$0xff]
        %v686 = vld [vmem:[#allocation2 + $0x28] sm:$0xff]
        %v687 = vld [vmem:[#allocation2 + $0x40] sm:$0xff]
        %v688 = vld [vmem:[#allocation2 + $0x48] sm:$0xff]
        %v689 = vld [vmem:[#allocation2 + $0x50] sm:$0xff]
        %v690 = vld [vmem:[#allocation2 + $0x58] sm:$0xff]
        %v691 = vld [vmem:[#allocation2 + $0x70] sm:$0xff]
        %v692 = vld [vmem:[#allocation2 + $0x78] sm:$0xff]
        %v693 = vld [vmem:[#allocation2 + $0x80] sm:$0xff]
        %v694 = vld [vmem:[#allocation2 + $0x88] sm:$0xff]
        %v695 = vld [vmem:[#allocation2 + $0xa0] sm:$0xff]
        %v696 = vld [vmem:[#allocation2 + $0xa8] sm:$0xff]
        %v697 = vld [vmem:[#allocation2 + $0xb0] sm:$0xff]
        %v698 = vld [vmem:[#allocation2 + $0xb8] sm:$0xff]
        %v699 = vld [vmem:[#allocation2 + $0xd0] sm:$0xff]
        %v700 = vld [vmem:[#allocation2 + $0xd8] sm:$0xff]
        %v701 = vld [vmem:[#allocation2 + $0xe0] sm:$0xff]
        %v702 = vld [vmem:[#allocation2 + $0xe8] sm:$0xff]
        %v703 = vld [vmem:[#allocation2 + $0x100] sm:$0xff]
        %v704 = vld [vmem:[#allocation2 + $0x108] sm:$0xff]
        %v705 = vld [vmem:[#allocation2 + $0x110] sm:$0xff]
        %v706 = vld [vmem:[#allocation2 + $0x118] sm:$0xff]
        %v707 = vld [vmem:[#allocation2 + $0x130] sm:$0xff]
        %v708 = vld [vmem:[#allocation2 + $0x138] sm:$0xff]
        %v709 = vld [vmem:[#allocation2 + $0x140] sm:$0xff]
        %v710 = vld [vmem:[#allocation2 + $0x148] sm:$0xff]
        %v711 = vld [vmem:[#allocation2 + $0x160] sm:$0xff]
        %v712 = vld [vmem:[#allocation2 + $0x168] sm:$0xff]
        %v713 = vld [vmem:[#allocation2 + $0x170] sm:$0xff]
        %v714 = vld [vmem:[#allocation2 + $0x178] sm:$0xff]
        %v715 = vld [vmem:[#allocation2 + $0x190] sm:$0xff]
        %v716 = vld [vmem:[#allocation2 + $0x198] sm:$0xff]
        %v717 = vld [vmem:[#allocation2 + $0x1a0] sm:$0xff]
        %v718 = vld [vmem:[#allocation2 + $0x1a8] sm:$0xff]
        %v719 = vld [vmem:[#allocation2 + $0x1c0] sm:$0xff]
        %v720 = vld [vmem:[#allocation2 + $0x1c8] sm:$0xff]
        %v721 = vld [vmem:[#allocation2 + $0x1d0] sm:$0xff]
        %v722 = vld [vmem:[#allocation2 + $0x1d8] sm:$0xff]
        %v723 = vld [vmem:[#allocation2 + $0x1f0] sm:$0xff]
        %v724 = vld [vmem:[#allocation2 + $0x1f8] sm:$0xff]
        %v725 = vld [vmem:[#allocation2 + $0x200] sm:$0xff]
        %v726 = vld [vmem:[#allocation2 + $0x208] sm:$0xff]
        %v727 = vld [vmem:[#allocation2 + $0x220] sm:$0xff]
        %v728 = vld [vmem:[#allocation2 + $0x228] sm:$0xff]
        %v729 = vld [vmem:[#allocation2 + $0x230] sm:$0xff]
        %v730 = vld [vmem:[#allocation2 + $0x238] sm:$0xff]
        %v731 = vld [vmem:[#allocation2 + $0x250] sm:$0xff]
        %v732 = vld [vmem:[#allocation2 + $0x258] sm:$0xff]
        %v733 = vld [vmem:[#allocation2 + $0x260] sm:$0xff]
        %v734 = vld [vmem:[#allocation2 + $0x268] sm:$0xff]
        %v735 = vld [vmem:[#allocation2 + $0x280] sm:$0xff]
        %v736 = vld [vmem:[#allocation2 + $0x288] sm:$0xff]
        %v737 = vld [vmem:[#allocation2 + $0x290] sm:$0xff]
        %v738 = vld [vmem:[#allocation2 + $0x298] sm:$0xff]
        %v739 = vld [vmem:[#allocation2 + $0x2b0] sm:$0xff]
        %v740 = vld [vmem:[#allocation2 + $0x2b8] sm:$0xff]
        %v741 = vld [vmem:[#allocation2 + $0x2c0] sm:$0xff]
        %v742 = vld [vmem:[#allocation2 + $0x2c8] sm:$0xff]
        %v743 = vld [vmem:[#allocation2 + $0x2e0] sm:$0xff]
        %v744 = vld [vmem:[#allocation2 + $0x2e8] sm:$0xff]
        %v745 = vld [vmem:[#allocation2 + $0x2f0] sm:$0xff]
        %v746 = vld [vmem:[#allocation2 + $0x2f8] sm:$0xff]
        %s747 = scalar_lea.vmem [#allocation2], 784
        %v748 = vld [vmem:[%s747] ss:$8 sm:$0xf]
        %v750 = vperm.slane %v748, 0
        %v751 = vperm.slane %v748, 1
        %v752 = vperm.slane %v748, 2
        %v753 = vperm.slane %v748, 3
        %758 = vmatpush.msra.mxu0 %v743
        %759 = vmatpush.msra.mxu0 %v739
        %760 = vmatpush.msra.mxu0 %v735
        %761 = vmatpush.msra.mxu0 %v731
        %762 = vmatpush.msra.mxu0 %v727
        %763 = vmatpush.msra.mxu0 %v723
        %764 = vmatpush.msra.mxu0 %v719
        %765 = vmatpush.msra.mxu0 %v715
        %766 = vmatpush.msra.mxu0 %v711
        %767 = vmatpush.msra.mxu0 %v707
        %768 = vmatpush.msra.mxu0 %v703
        %769 = vmatpush.msra.mxu0 %v699
        %770 = vmatpush.msra.mxu0 %v695
        %771 = vmatpush.msra.mxu0 %v691
        %772 = vmatpush.msra.mxu0 %v687
        %773 = vmatpush.msra.mxu0 %v683
        %774 = vmatmul.f32.gmra.mxu0 %v682
        %v775 = vpop.f32.mrf.mxu0
        %v776 = vadd.f32 %v750, %v775
        %777 = vdwg.mxu0
        %778 = vmatpush.msra.mxu0 %v744
        %779 = vmatpush.msra.mxu0 %v740
        %780 = vmatpush.msra.mxu0 %v736
        %781 = vmatpush.msra.mxu0 %v732
        %782 = vmatpush.msra.mxu0 %v728
        %783 = vmatpush.msra.mxu0 %v724
        %784 = vmatpush.msra.mxu0 %v720
        %785 = vmatpush.msra.mxu0 %v716
        %786 = vmatpush.msra.mxu0 %v712
        %787 = vmatpush.msra.mxu0 %v708
        %788 = vmatpush.msra.mxu0 %v704
        %789 = vmatpush.msra.mxu0 %v700
        %790 = vmatpush.msra.mxu0 %v696
        %791 = vmatpush.msra.mxu0 %v692
        %792 = vmatpush.msra.mxu0 %v688
        %793 = vmatpush.msra.mxu0 %v684
        %794 = vmatmul.f32.gmra.mxu0 %v682
        %v795 = vpop.f32.mrf.mxu0
        %v796 = vadd.f32 %v751, %v795
        %797 = vdwg.mxu0
        %798 = vmatpush.msra.mxu0 %v745
        %799 = vmatpush.msra.mxu0 %v741
        %800 = vmatpush.msra.mxu0 %v737
        %801 = vmatpush.msra.mxu0 %v733
        %802 = vmatpush.msra.mxu0 %v729
        %803 = vmatpush.msra.mxu0 %v725
        %804 = vmatpush.msra.mxu0 %v721
        %805 = vmatpush.msra.mxu0 %v717
        %806 = vmatpush.msra.mxu0 %v713
        %807 = vmatpush.msra.mxu0 %v709
        %808 = vmatpush.msra.mxu0 %v705
        %809 = vmatpush.msra.mxu0 %v701
        %810 = vmatpush.msra.mxu0 %v697
        %811 = vmatpush.msra.mxu0 %v693
        %812 = vmatpush.msra.mxu0 %v689
        %813 = vmatpush.msra.mxu0 %v685
        %814 = vmatmul.f32.gmra.mxu0 %v682
        %v815 = vpop.f32.mrf.mxu0
        %v816 = vadd.f32 %v752, %v815
        %817 = vdwg.mxu0
        %818 = vmatpush.msra.mxu0 %v746
        %819 = vmatpush.msra.mxu0 %v742
        %820 = vmatpush.msra.mxu0 %v738
        %821 = vmatpush.msra.mxu0 %v734
        %822 = vmatpush.msra.mxu0 %v730
        %823 = vmatpush.msra.mxu0 %v726
        %824 = vmatpush.msra.mxu0 %v722
        %825 = vmatpush.msra.mxu0 %v718
        %826 = vmatpush.msra.mxu0 %v714
        %827 = vmatpush.msra.mxu0 %v710
        %828 = vmatpush.msra.mxu0 %v706
        %829 = vmatpush.msra.mxu0 %v702
        %830 = vmatpush.msra.mxu0 %v698
        %831 = vmatpush.msra.mxu0 %v694
        %832 = vmatpush.msra.mxu0 %v690
        %833 = vmatpush.msra.mxu0 %v686
        %834 = vmatmul.f32.gmra.mxu0 %v682
        %v835 = vpop.f32.mrf.mxu0
        %v836 = vadd.f32 %v753, %v835
        %837 = vdwg.mxu0
        %v838 = vmul.f32 %v776, 0.5
        %v839 = vmul.f32 %v796, 0.5
        %v840 = vmul.f32 %v816, 0.5
        %v841 = vmul.f32 %v836, 0.5
        %v842 = vmul.f32 %v776, 0.70710677
        %v843 = vmul.f32 %v796, 0.70710677
        %v844 = vmul.f32 %v816, 0.70710677
        %v845 = vmul.f32 %v836, 0.70710677
        %v846 = vmul.f32 %v842, %v842
        %v847 = vmin.f32 16.0, %v846
        %v848 = vmul.f32 %v847, 2.1237322e-06
        %v849 = vadd.f32 %v848, 0.00028619796
        %v850 = vmul.f32 %v847, %v849
        %v851 = vadd.f32 %v850, 0.0036580483
        %v852 = vmul.f32 %v847, %v851
        %v853 = vadd.f32 %v852, 0.05243302
        %v854 = vmul.f32 %v847, %v853
        %v855 = vadd.f32 %v854, 0.18741608
        %v856 = vmul.f32 %v847, %v855
        %v857 = vadd.f32 %v856, 1.1283791
        %v858 = vmul.f32 %v842, %v857
        %v859 = vmul.f32 %v847, 3.8918573e-05
        %v860 = vadd.f32 %v859, 0.001143296
        %v861 = vmul.f32 %v847, %v860
        %v862 = vadd.f32 %v861, 0.014752088
        %v863 = vmul.f32 %v847, %v862
        %v864 = vadd.f32 %v863, 0.112945676
        %v865 = vmul.f32 %v847, %v864
        %v866 = vadd.f32 %v865, 0.4994258
        %v867 = vmul.f32 %v847, %v866
        %v868 = vadd.f32 %v867, 1.0
        %v869 = vrcp.pop %v868
        %v870 = vmul.f32 %v868, %v869
        %v871 = vsub.f32 1.0, %v870
        %v872 = vmul.f32 %v869, %v871
        %v873 = vadd.f32 %v869, %v872
        %vm874 = vweird.f32 %v868
        %vm875 = vweird.f32 %v869
        %vm876 = vmor %vm874, %vm875
        %v877 = vsel %vm876, %v869, %v873
        %v878 = vand.u32 2147483647, %v868
        %vm879 = vcmp.eq.f32.partialorder %v878, 8.507059e+37
        %v880 = vand.u32 %v868, 2147483648
        %v881 = vor.u32 1.1754944e-38, %v880
        %v882 = vsel %vm879, %v881, %v877
        %v883 = vmul.f32 %v858, %v882
        %v884 = vmin.f32 %v883, 1.0
        %v885 = vmax.f32 %v884, -1.0
        %v886 = vmul.f32 %v843, %v843
        %v887 = vmin.f32 16.0, %v886
        %v888 = vmul.f32 %v887, 2.1237322e-06
        %v889 = vadd.f32 %v888, 0.00028619796
        %v890 = vmul.f32 %v887, %v889
        %v891 = vadd.f32 %v890, 0.0036580483
        %v892 = vmul.f32 %v887, %v891
        %v893 = vadd.f32 %v892, 0.05243302
        %v894 = vmul.f32 %v887, %v893
        %v895 = vadd.f32 %v894, 0.18741608
        %v896 = vmul.f32 %v887, %v895
        %v897 = vadd.f32 %v896, 1.1283791
        %v898 = vmul.f32 %v843, %v897
        %v899 = vmul.f32 %v887, 3.8918573e-05
        %v900 = vadd.f32 %v899, 0.001143296
        %v901 = vmul.f32 %v887, %v900
        %v902 = vadd.f32 %v901, 0.014752088
        %v903 = vmul.f32 %v887, %v902
        %v904 = vadd.f32 %v903, 0.112945676
        %v905 = vmul.f32 %v887, %v904
        %v906 = vadd.f32 %v905, 0.4994258
        %v907 = vmul.f32 %v887, %v906
        %v908 = vadd.f32 %v907, 1.0
        %v909 = vrcp.pop %v908
        %v910 = vmul.f32 %v908, %v909
        %v911 = vsub.f32 1.0, %v910
        %v912 = vmul.f32 %v909, %v911
        %v913 = vadd.f32 %v909, %v912
        %vm914 = vweird.f32 %v908
        %vm915 = vweird.f32 %v909
        %vm916 = vmor %vm914, %vm915
        %v917 = vsel %vm916, %v909, %v913
        %v918 = vand.u32 2147483647, %v908
        %vm919 = vcmp.eq.f32.partialorder %v918, 8.507059e+37
        %v920 = vand.u32 %v908, 2147483648
        %v921 = vor.u32 1.1754944e-38, %v920
        %v922 = vsel %vm919, %v921, %v917
        %v923 = vmul.f32 %v898, %v922
        %v924 = vmin.f32 %v923, 1.0
        %v925 = vmax.f32 %v924, -1.0
        %v926 = vmul.f32 %v844, %v844
        %v927 = vmin.f32 16.0, %v926
        %v928 = vmul.f32 %v927, 2.1237322e-06
        %v929 = vadd.f32 %v928, 0.00028619796
        %v930 = vmul.f32 %v927, %v929
        %v931 = vadd.f32 %v930, 0.0036580483
        %v932 = vmul.f32 %v927, %v931
        %v933 = vadd.f32 %v932, 0.05243302
        %v934 = vmul.f32 %v927, %v933
        %v935 = vadd.f32 %v934, 0.18741608
        %v936 = vmul.f32 %v927, %v935
        %v937 = vadd.f32 %v936, 1.1283791
        %v938 = vmul.f32 %v844, %v937
        %v939 = vmul.f32 %v927, 3.8918573e-05
        %v940 = vadd.f32 %v939, 0.001143296
        %v941 = vmul.f32 %v927, %v940
        %v942 = vadd.f32 %v941, 0.014752088
        %v943 = vmul.f32 %v927, %v942
        %v944 = vadd.f32 %v943, 0.112945676
        %v945 = vmul.f32 %v927, %v944
        %v946 = vadd.f32 %v945, 0.4994258
        %v947 = vmul.f32 %v927, %v946
        %v948 = vadd.f32 %v947, 1.0
        %v949 = vrcp.pop %v948
        %v950 = vmul.f32 %v948, %v949
        %v951 = vsub.f32 1.0, %v950
        %v952 = vmul.f32 %v949, %v951
        %v953 = vadd.f32 %v949, %v952
        %vm954 = vweird.f32 %v948
        %vm955 = vweird.f32 %v949
        %vm956 = vmor %vm954, %vm955
        %v957 = vsel %vm956, %v949, %v953
        %v958 = vand.u32 2147483647, %v948
        %vm959 = vcmp.eq.f32.partialorder %v958, 8.507059e+37
        %v960 = vand.u32 %v948, 2147483648
        %v961 = vor.u32 1.1754944e-38, %v960
        %v962 = vsel %vm959, %v961, %v957
        %v963 = vmul.f32 %v938, %v962
        %v964 = vmin.f32 %v963, 1.0
        %v965 = vmax.f32 %v964, -1.0
        %v966 = vmul.f32 %v845, %v845
        %v967 = vmin.f32 16.0, %v966
        %v968 = vmul.f32 %v967, 2.1237322e-06
        %v969 = vadd.f32 %v968, 0.00028619796
        %v970 = vmul.f32 %v967, %v969
        %v971 = vadd.f32 %v970, 0.0036580483
        %v972 = vmul.f32 %v967, %v971
        %v973 = vadd.f32 %v972, 0.05243302
        %v974 = vmul.f32 %v967, %v973
        %v975 = vadd.f32 %v974, 0.18741608
        %v976 = vmul.f32 %v967, %v975
        %v977 = vadd.f32 %v976, 1.1283791
        %v978 = vmul.f32 %v845, %v977
        %v979 = vmul.f32 %v967, 3.8918573e-05
        %v980 = vadd.f32 %v979, 0.001143296
        %v981 = vmul.f32 %v967, %v980
        %v982 = vadd.f32 %v981, 0.014752088
        %v983 = vmul.f32 %v967, %v982
        %v984 = vadd.f32 %v983, 0.112945676
        %v985 = vmul.f32 %v967, %v984
        %v986 = vadd.f32 %v985, 0.4994258
        %v987 = vmul.f32 %v967, %v986
        %v988 = vadd.f32 %v987, 1.0
        %v989 = vrcp.pop %v988
        %v990 = vmul.f32 %v988, %v989
        %v991 = vsub.f32 1.0, %v990
        %v992 = vmul.f32 %v989, %v991
        %v993 = vadd.f32 %v989, %v992
        %vm994 = vweird.f32 %v988
        %vm995 = vweird.f32 %v989
        %vm996 = vmor %vm994, %vm995
        %v997 = vsel %vm996, %v989, %v993
        %v998 = vand.u32 2147483647, %v988
        %vm999 = vcmp.eq.f32.partialorder %v998, 8.507059e+37
        %v1000 = vand.u32 %v988, 2147483648
        %v1001 = vor.u32 1.1754944e-38, %v1000
        %v1002 = vsel %vm999, %v1001, %v997
        %v1003 = vmul.f32 %v978, %v1002
        %v1004 = vmin.f32 %v1003, 1.0
        %v1005 = vmax.f32 %v1004, -1.0
        %v1006 = vadd.f32 %v885, 1.0
        %v1007 = vadd.f32 %v925, 1.0
        %v1008 = vadd.f32 %v965, 1.0
        %v1009 = vadd.f32 %v1005, 1.0
        %v1010 = vmul.f32 %v838, %v1006
        %v1011 = vmul.f32 %v839, %v1007
        %v1012 = vmul.f32 %v840, %v1008
        %v1013 = vmul.f32 %v841, %v1009
        %v1014 = vld [vmem:[#allocation4] sm:$0xff]
        %v1015 = vld [vmem:[#allocation4 + $0x8] sm:$0xff]
        %v1016 = vld [vmem:[#allocation4 + $0x10] sm:$0xff]
        %v1017 = vld [vmem:[#allocation4 + $0x18] sm:$0xff]
        %v1018 = vld [vmem:[#allocation4 + $0x20] sm:$0xff]
        %v1019 = vld [vmem:[#allocation4 + $0x28] sm:$0xff]
        %v1020 = vld [vmem:[#allocation4 + $0x30] sm:$0xff]
        %v1021 = vld [vmem:[#allocation4 + $0x38] sm:$0xff]
        %v1022 = vld [vmem:[#allocation4 + $0x40] sm:$0xff]
        %v1023 = vld [vmem:[#allocation4 + $0x48] sm:$0xff]
        %v1024 = vld [vmem:[#allocation4 + $0x50] sm:$0xff]
        %v1025 = vld [vmem:[#allocation4 + $0x58] sm:$0xff]
        %v1026 = vld [vmem:[#allocation4 + $0x60] sm:$0xff]
        %v1027 = vld [vmem:[#allocation4 + $0x68] sm:$0xff]
        %v1028 = vld [vmem:[#allocation4 + $0x70] sm:$0xff]
        %v1029 = vld [vmem:[#allocation4 + $0x78] sm:$0xff]
        %v1030 = vld [vmem:[#allocation4 + $0x80] sm:$0xff]
        %v1031 = vld [vmem:[#allocation4 + $0x88] sm:$0xff]
        %v1032 = vld [vmem:[#allocation4 + $0x90] sm:$0xff]
        %v1033 = vld [vmem:[#allocation4 + $0x98] sm:$0xff]
        %v1034 = vld [vmem:[#allocation4 + $0xa0] sm:$0xff]
        %v1035 = vld [vmem:[#allocation4 + $0xa8] sm:$0xff]
        %v1036 = vld [vmem:[#allocation4 + $0xb0] sm:$0xff]
        %v1037 = vld [vmem:[#allocation4 + $0xb8] sm:$0xff]
        %v1038 = vld [vmem:[#allocation4 + $0xc0] sm:$0xff]
        %v1039 = vld [vmem:[#allocation4 + $0xc8] sm:$0xff]
        %v1040 = vld [vmem:[#allocation4 + $0xd0] sm:$0xff]
        %v1041 = vld [vmem:[#allocation4 + $0xd8] sm:$0xff]
        %v1042 = vld [vmem:[#allocation4 + $0xe0] sm:$0xff]
        %v1043 = vld [vmem:[#allocation4 + $0xe8] sm:$0xff]
        %v1044 = vld [vmem:[#allocation4 + $0xf0] sm:$0xff]
        %v1045 = vld [vmem:[#allocation4 + $0xf8] sm:$0xff]
        %v1046 = vld [vmem:[#allocation4 + $0x100] sm:$0xff]
        %v1047 = vld [vmem:[#allocation4 + $0x108] sm:$0xff]
        %v1048 = vld [vmem:[#allocation4 + $0x110] sm:$0xff]
        %v1049 = vld [vmem:[#allocation4 + $0x118] sm:$0xff]
        %v1050 = vld [vmem:[#allocation4 + $0x120] sm:$0xff]
        %v1051 = vld [vmem:[#allocation4 + $0x128] sm:$0xff]
        %v1052 = vld [vmem:[#allocation4 + $0x130] sm:$0xff]
        %v1053 = vld [vmem:[#allocation4 + $0x138] sm:$0xff]
        %v1054 = vld [vmem:[#allocation4 + $0x140] sm:$0xff]
        %v1055 = vld [vmem:[#allocation4 + $0x148] sm:$0xff]
        %v1056 = vld [vmem:[#allocation4 + $0x150] sm:$0xff]
        %v1057 = vld [vmem:[#allocation4 + $0x158] sm:$0xff]
        %v1058 = vld [vmem:[#allocation4 + $0x160] sm:$0xff]
        %v1059 = vld [vmem:[#allocation4 + $0x168] sm:$0xff]
        %v1060 = vld [vmem:[#allocation4 + $0x170] sm:$0xff]
        %v1061 = vld [vmem:[#allocation4 + $0x178] sm:$0xff]
        %v1062 = vld [vmem:[#allocation4 + $0x180] sm:$0xff]
        %v1063 = vld [vmem:[#allocation4 + $0x188] sm:$0xff]
        %v1064 = vld [vmem:[#allocation4 + $0x190] sm:$0xff]
        %v1065 = vld [vmem:[#allocation4 + $0x198] sm:$0xff]
        %v1066 = vld [vmem:[#allocation4 + $0x1a0] sm:$0xff]
        %v1067 = vld [vmem:[#allocation4 + $0x1a8] sm:$0xff]
        %v1068 = vld [vmem:[#allocation4 + $0x1b0] sm:$0xff]
        %v1069 = vld [vmem:[#allocation4 + $0x1b8] sm:$0xff]
        %v1070 = vld [vmem:[#allocation4 + $0x1c0] sm:$0xff]
        %v1071 = vld [vmem:[#allocation4 + $0x1c8] sm:$0xff]
        %v1072 = vld [vmem:[#allocation4 + $0x1d0] sm:$0xff]
        %v1073 = vld [vmem:[#allocation4 + $0x1d8] sm:$0xff]
        %v1074 = vld [vmem:[#allocation4 + $0x1e0] sm:$0xff]
        %v1075 = vld [vmem:[#allocation4 + $0x1e8] sm:$0xff]
        %v1076 = vld [vmem:[#allocation4 + $0x1f0] sm:$0xff]
        %v1077 = vld [vmem:[#allocation4 + $0x1f8] sm:$0xff]
        %v1078 = vld [vmem:[#allocation4 + $0x200] sm:$0x1]
        %v1079 = vperm.slane %v1078, 0
        %1080 = vmatpush.msra.mxu0 %v1029
        %1081 = vmatpush.msra.mxu0 %v1028
        %1082 = vmatpush.msra.mxu0 %v1027
        %1083 = vmatpush.msra.mxu0 %v1026
        %1084 = vmatpush.msra.mxu0 %v1025
        %1085 = vmatpush.msra.mxu0 %v1024
        %1086 = vmatpush.msra.mxu0 %v1023
        %1087 = vmatpush.msra.mxu0 %v1022
        %1088 = vmatpush.msra.mxu0 %v1021
        %1089 = vmatpush.msra.mxu0 %v1020
        %1090 = vmatpush.msra.mxu0 %v1019
        %1091 = vmatpush.msra.mxu0 %v1018
        %1092 = vmatpush.msra.mxu0 %v1017
        %1093 = vmatpush.msra.mxu0 %v1016
        %1094 = vmatpush.msra.mxu0 %v1015
        %1095 = vmatpush.msra.mxu0 %v1014
        %1096 = vmatmul.f32.gmra.mxu0 %v1010
        %v1097 = vpop.f32.mrf.mxu0
        %v1098 = vadd.f32 %v1079, %v1097
        %1099 = vdwg.mxu0
        %1100 = vmatpush.msra.mxu0 %v1045
        %1101 = vmatpush.msra.mxu0 %v1044
        %1102 = vmatpush.msra.mxu0 %v1043
        %1103 = vmatpush.msra.mxu0 %v1042
        %1104 = vmatpush.msra.mxu0 %v1041
        %1105 = vmatpush.msra.mxu0 %v1040
        %1106 = vmatpush.msra.mxu0 %v1039
        %1107 = vmatpush.msra.mxu0 %v1038
        %1108 = vmatpush.msra.mxu0 %v1037
        %1109 = vmatpush.msra.mxu0 %v1036
        %1110 = vmatpush.msra.mxu0 %v1035
        %1111 = vmatpush.msra.mxu0 %v1034
        %1112 = vmatpush.msra.mxu0 %v1033
        %1113 = vmatpush.msra.mxu0 %v1032
        %1114 = vmatpush.msra.mxu0 %v1031
        %1115 = vmatpush.msra.mxu0 %v1030
        %1116 = vmatmul.f32.gmra.mxu0 %v1011
        %v1117 = vpop.f32.mrf.mxu0
        %v1118 = vadd.f32 %v1098, %v1117
        %1119 = vdwg.mxu0
        %1120 = vmatpush.msra.mxu0 %v1061
        %1121 = vmatpush.msra.mxu0 %v1060
        %1122 = vmatpush.msra.mxu0 %v1059
        %1123 = vmatpush.msra.mxu0 %v1058
        %1124 = vmatpush.msra.mxu0 %v1057
        %1125 = vmatpush.msra.mxu0 %v1056
        %1126 = vmatpush.msra.mxu0 %v1055
        %1127 = vmatpush.msra.mxu0 %v1054
        %1128 = vmatpush.msra.mxu0 %v1053
        %1129 = vmatpush.msra.mxu0 %v1052
        %1130 = vmatpush.msra.mxu0 %v1051
        %1131 = vmatpush.msra.mxu0 %v1050
        %1132 = vmatpush.msra.mxu0 %v1049
        %1133 = vmatpush.msra.mxu0 %v1048
        %1134 = vmatpush.msra.mxu0 %v1047
        %1135 = vmatpush.msra.mxu0 %v1046
        %1136 = vmatmul.f32.gmra.mxu0 %v1012
        %v1137 = vpop.f32.mrf.mxu0
        %v1138 = vadd.f32 %v1118, %v1137
        %1139 = vdwg.mxu0
        %1140 = vmatpush.msra.mxu0 %v1077
        %1141 = vmatpush.msra.mxu0 %v1076
        %1142 = vmatpush.msra.mxu0 %v1075
        %1143 = vmatpush.msra.mxu0 %v1074
        %1144 = vmatpush.msra.mxu0 %v1073
        %1145 = vmatpush.msra.mxu0 %v1072
        %1146 = vmatpush.msra.mxu0 %v1071
        %1147 = vmatpush.msra.mxu0 %v1070
        %1148 = vmatpush.msra.mxu0 %v1069
        %1149 = vmatpush.msra.mxu0 %v1068
        %1150 = vmatpush.msra.mxu0 %v1067
        %1151 = vmatpush.msra.mxu0 %v1066
        %1152 = vmatpush.msra.mxu0 %v1065
        %1153 = vmatpush.msra.mxu0 %v1064
        %1154 = vmatpush.msra.mxu0 %v1063
        %1155 = vmatpush.msra.mxu0 %v1062
        %1156 = vmatmul.f32.gmra.mxu0 %v1013
        %v1157 = vpop.f32.mrf.mxu0
        %v1158 = vadd.f32 %v1138, %v1157
        %1159 = vdwg.mxu0
        %v1160 = vadd.f32 %v618, %v1158
        %1161 = vst [vmem:[%s226] sm:$0xff] %v1160
        %p1162 = scmp.lt.s32.totalorder %s17, 1
        %s1163 = scalar_select %p1162, %s17, 1
        %s1164 = smul.addr %s1163, 8
        %s1165 = scalar_lea.vmem %s4, %s1164
        // Predicated region
        $region45: #{block_up_forward.1} parent=35 // pred_check
          %p1166 = pneg %p124
        $region46: #{block_up_forward.1} parent=35 // pred_check_branch
          %1168 = sbr.rel (%p1166) target = $region48
        $region47: #{block_up_forward.1} parent=35 // pred_region
          _
        $region48: #{block_up_forward.1} parent=35 // pred_fallthru
          _
      $region36: #{block_up_forward.1} parent=5 // pred_fallthru
        _
      %p1169 = scmp.le.s32.totalorder 2, %s12
      // Predicated region
      $region49: #{block_up_forward.1} parent=5 // pred_check
        %p1170 = pneg %p1169
      $region50: #{block_up_forward.1} parent=5 // pred_check_branch
        %1172 = sbr.rel (%p1170) target = $region52
      $region51: #{block_up_forward.1} parent=5 // pred_region
        %s1173 = ssub.s32 %s12, 2
        // Predicated region
        $region53: #{block_up_forward.1} parent=51 // pred_check
          %p1174 = pneg %p130
        $region54: #{block_up_forward.1} parent=51 // pred_check_branch
          %1176 = sbr.rel (%p1174) target = $region56
        $region55: #{block_up_forward.1} parent=51 // pred_region
          %p1177 = scmp.lt.s32.totalorder %s18, 1
          %s1178 = scalar_select %p1177, %s18, 1
          %s1179 = smul.addr %s1178, 8
          %s1180 = scalar_lea.vmem %s4, %s1179
        $region56: #{block_up_forward.1} parent=51 // pred_fallthru
          _
      $region52: #{block_up_forward.1} parent=5 // pred_fallthru
        _
    $region6: #{block_up_forward.1} parent=1 // loop_footer
      %s16 = sadd.s32 1, %s12
    $region7: #{block_up_forward.1} parent=1 // loop_footer_branch
      %11 = sbr.rel target = $region3
    $region8: #{block_up_forward.1} parent=1 // loop_exit
      _
    %1181 = vsyncpa [#allocation3], 1
    %s1182 = scalar_lea.sflag [#allocation3], 1
    %1183 = vsyncpa %s1182, 1
    %1184 = vsyncpa [#allocation5], 1

</llo_original>
